<compile_context>
chip_gen: v6e
topology: v6e:2x2x1
jax: 0.10.0
libtpu: 0.0.40
codegen_flags: <defaults>
</compile_context>

<pallas_src>
import functools

import jax
import jax.numpy as jnp
from jax import lax
from jax.experimental import pallas as pl
from jax.experimental.pallas import tpu as pltpu

_SQRT_HALF = 0.7071067811865476


def _erf_approx(z):
    # Abramowitz & Stegun 7.1.26 rational approximation (max abs err ~1.5e-7).
    # exp() lands on the EUP slot; the reciprocal is full precision.
    a1, a2, a3, a4, a5 = (0.254829592, -0.284496736, 1.421413741,
                          -1.453152027, 1.061405429)
    p = 0.3275911
    sgn = jnp.where(z >= 0.0, 1.0, -1.0)
    az = jnp.abs(z)
    t = pl.reciprocal(1.0 + p * az, approx=False)
    poly = t * (a1 + t * (a2 + t * (a3 + t * (a4 + t * a5))))
    return sgn * (1.0 - poly * jnp.exp(-az * az))


def _gelu(x):
    # torch.nn.GELU() (exact erf form) to ~1e-7.
    return 0.5 * x * (1.0 + _erf_approx(x * _SQRT_HALF))


def _mednext_block_kernel(xpad_ref, mask_ref, wdw_ref, bdw_ref, gamma_ref,
                          beta_ref, w2_ref, b2_ref, w3_ref, b3_ref, out_ref,
                          *, width, pad):
    # xpad_ref : (1, C, HW + 2*pad)  flat, zero-padded channel planes
    # mask_ref : (2, HW)             [left-neighbour valid, right-neighbour valid]
    # wdw_ref  : (C, 9), bdw/gamma/beta : (C, 1)
    # w2_ref   : (CE, C), b2 : (CE, 1), w3 : (CO, CE), b3 : (CO, 1)
    # out_ref  : (1, CO, HW)
    C = wdw_ref.shape[0]
    CE = w2_ref.shape[0]
    HW = out_ref.shape[2]
    inv_hw = 1.0 / float(HW)

    mask_l = mask_ref[0:1, :]          # (1, HW): column j >= 1
    mask_r = mask_ref[1:2, :]          # (1, HW): column j <= W-2

    # ---- conv1: depthwise 3x3, stride 1, padding 1 (all channels at once) ----
    acc = jnp.zeros((C, HW), jnp.float32)
    for a in range(3):
        for b in range(3):
            off = pad + (a - 1) * width + (b - 1)
            tap = xpad_ref[0, :, off:off + HW]          # (C, HW) flat shift
            if b == 0:
                tap = tap * mask_l                      # kill row-wrap (j-1)
            elif b == 2:
                tap = tap * mask_r                      # kill row-wrap (j+1)
            acc = acc + tap * wdw_ref[:, 3 * a + b:3 * a + b + 1]
    y = acc + bdw_ref[...]

    # ---- GroupNorm(num_groups=C): per-channel, biased two-pass variance ----
    mean = jnp.sum(y, axis=1, keepdims=True) * inv_hw
    yc = y - mean
    var = jnp.sum(yc * yc, axis=1, keepdims=True) * inv_hw
    normed = yc * lax.rsqrt(var + 1e-5) * gamma_ref[...] + beta_ref[...]

    # ---- conv2 (1x1 expand): channel contraction as VPU broadcast-MACs ----
    # (toy C=4/CE=8; use jnp.dot -> MXU for production channel counts)
    h = jnp.zeros((CE, HW), jnp.float32)
    for c in range(C):
        h = h + w2_ref[:, c:c + 1] * normed[c:c + 1, :]
    g = _gelu(h + b2_ref[...])

    # ---- conv3 (1x1 project) fused with the residual add (+ x) ----
    out = xpad_ref[0, :, pad:pad + HW] + b3_ref[...]    # residual (CO == C)
    for e in range(CE):
        out = out + w3_ref[:, e:e + 1] * g[e:e + 1, :]
    out_ref[0, :, :] = out


def mednext_block(x, params):
    """Pallas forward of MedNeXtBlock(spatial_dims=2, res_block=True)."""
    wdw, bdw, gamma, beta, w2, b2, w3, b3 = params
    N, C, H, W = x.shape
    CE = w2.shape[0]
    CO = w3.shape[0]
    assert CO == C, "res_block=True requires out_channels == in_channels"
    HW = H * W
    P = W + 1                       # flat pad covers every vertical-shift tap

    f32 = jnp.float32
    xflat = x.reshape(N, C, HW).astype(f32)      # free reshape of NCHW layout
    xpad = jnp.pad(xflat, ((0, 0), (0, 0), (P, P)))

    col = jnp.arange(HW, dtype=jnp.int32) % W
    masks = jnp.stack([(col >= 1).astype(f32),
                       (col <= W - 2).astype(f32)])          # (2, HW)

    colv = lambda v: v.reshape(-1, 1).astype(f32)
    wdw_flat = wdw.reshape(C, 9).astype(f32)
    w2f = w2.astype(f32)
    w3f = w3.astype(f32)

    kernel = functools.partial(_mednext_block_kernel, width=W, pad=P)

    flops = 2 * N * HW * (9 * C + C * CE + CE * CO) + 10 * N * C * HW
    bytes_accessed = 4 * (xpad.size + masks.size + N * CO * HW + wdw_flat.size
                          + w2f.size + w3f.size + 3 * C + CE + 2 * CO)

    out_flat = pl.pallas_call(
        kernel,
        out_shape=jax.ShapeDtypeStruct((N, CO, HW), f32),
        grid=(N,),
        in_specs=[
            pl.BlockSpec((1, C, HW + 2 * P), lambda n: (n, 0, 0)),
            pl.BlockSpec((2, HW), lambda n: (0, 0)),
            pl.BlockSpec((C, 9), lambda n: (0, 0)),
            pl.BlockSpec((C, 1), lambda n: (0, 0)),
            pl.BlockSpec((C, 1), lambda n: (0, 0)),
            pl.BlockSpec((C, 1), lambda n: (0, 0)),
            pl.BlockSpec((CE, C), lambda n: (0, 0)),
            pl.BlockSpec((CE, 1), lambda n: (0, 0)),
            pl.BlockSpec((CO, CE), lambda n: (0, 0)),
            pl.BlockSpec((CO, 1), lambda n: (0, 0)),
        ],
        out_specs=pl.BlockSpec((1, CO, HW), lambda n: (n, 0, 0)),
        compiler_params=pltpu.CompilerParams(
            dimension_semantics=("parallel",)),
        cost_estimate=pl.CostEstimate(
            flops=flops, transcendentals=N * CE * HW,
            bytes_accessed=bytes_accessed),
    )(xpad, masks, wdw_flat, colv(bdw), colv(gamma), colv(beta),
      w2f, colv(b2), w3f, colv(b3))
    return out_flat.reshape(N, CO, H, W)


def mednext_block_reference(x, params):
    """Pure-JAX reference of MedNeXtBlock.forward (exact erf GELU)."""
    wdw, bdw, gamma, beta, w2, b2, w3, b3 = params
    N, C, H, W = x.shape
    hp = lax.Precision.HIGHEST
    x = x.astype(jnp.float32)
    # conv1: depthwise Conv2d(C, C, 3, stride=1, padding=1, groups=C)
    y = lax.conv_general_dilated(
        x, wdw.astype(jnp.float32), window_strides=(1, 1),
        padding=((1, 1), (1, 1)),
        dimension_numbers=("NCHW", "OIHW", "NCHW"),
        feature_group_count=C, precision=hp)
    y = y + bdw[None, :, None, None]
    # GroupNorm(num_groups=C, num_channels=C)
    mean = jnp.mean(y, axis=(2, 3), keepdims=True)
    var = jnp.mean((y - mean) ** 2, axis=(2, 3), keepdims=True)
    y = (y - mean) / jnp.sqrt(var + 1e-5)
    y = y * gamma[None, :, None, None] + beta[None, :, None, None]
    # conv2 (1x1) + exact GELU + conv3 (1x1) + residual
    h = jnp.einsum("nchw,ec->nehw", y, w2, precision=hp) + b2[None, :, None, None]
    h = 0.5 * h * (1.0 + lax.erf(h * _SQRT_HALF))
    s = jnp.einsum("nehw,oe->nohw", h, w3, precision=hp) + b3[None, :, None, None]
    return s + x


if __name__ == "__main__":
    # Module config: spatial_dims=2, in_channels=4, out_channels=4,
    # expand_ratio=2, kernel_size=3, res_block=True
    N, C, H, W = 2, 4, 16, 16
    CO, E, K = 4, 2, 3
    CE = C * E

    key = jax.random.PRNGKey(0)
    ks = jax.random.split(key, 9)
    x = jax.random.normal(ks[0], (N, C, H, W), jnp.float32)
    wdw = 0.2 * jax.random.normal(ks[1], (C, 1, K, K), jnp.float32)   # conv1 (depthwise)
    bdw = 0.1 * jax.random.normal(ks[2], (C,), jnp.float32)
    gamma = 1.0 + 0.1 * jax.random.normal(ks[3], (C,), jnp.float32)   # GroupNorm affine
    beta = 0.1 * jax.random.normal(ks[4], (C,), jnp.float32)
    w2 = 0.2 * jax.random.normal(ks[5], (CE, C), jnp.float32)         # conv2 1x1
    b2 = 0.1 * jax.random.normal(ks[6], (CE,), jnp.float32)
    w3 = 0.2 * jax.random.normal(ks[7], (CO, CE), jnp.float32)        # conv3 1x1
    b3 = 0.1 * jax.random.normal(ks[8], (CO,), jnp.float32)
    params = (wdw, bdw, gamma, beta, w2, b2, w3, b3)

    out = mednext_block(x, params)
    out = jax.block_until_ready(out)
    assert out.shape == (N, CO, H, W), out.shape

    ref = mednext_block_reference(x, params)
    max_err = float(jnp.max(jnp.abs(out - ref)))
    if max_err > 5e-4:
        raise AssertionError(f"kernel/reference mismatch: max_err={max_err}")
    print("KERNEL_OK")
</pallas_src>

<mosaic_0001>
module attributes {stable_mosaic.version = 11 : i64} {
  func.func @_mednext_block_kernel(%arg0: i32, %arg1: memref<1x4x290xf32, #tpu.memory_space<vmem>>, %arg2: memref<2x256xf32, #tpu.memory_space<vmem>>, %arg3: memref<4x9xf32, #tpu.memory_space<vmem>>, %arg4: memref<4x1xf32, #tpu.memory_space<vmem>>, %arg5: memref<4x1xf32, #tpu.memory_space<vmem>>, %arg6: memref<4x1xf32, #tpu.memory_space<vmem>>, %arg7: memref<8x4xf32, #tpu.memory_space<vmem>>, %arg8: memref<8x1xf32, #tpu.memory_space<vmem>>, %arg9: memref<4x8xf32, #tpu.memory_space<vmem>>, %arg10: memref<4x1xf32, #tpu.memory_space<vmem>>, %arg11: memref<1x4x256xf32, #tpu.memory_space<vmem>>) attributes {dimension_semantics = [#tpu.dimension_semantics<parallel>], iteration_bounds = array<i64: 2>, scalar_prefetch = 0 : i64, scratch_operands = 0 : i64, tpu.core_type = #tpu.core_type<tc>, window_params = [{transform_indices = @transform_0, window_bounds = array<i64: 1, 4, 290>}, {pipeline_mode = #tpu.pipeline_mode<synchronous>, transform_indices = @transform_1, window_bounds = array<i64: 2, 256>}, {pipeline_mode = #tpu.pipeline_mode<synchronous>, transform_indices = @transform_2, window_bounds = array<i64: 4, 9>}, {pipeline_mode = #tpu.pipeline_mode<synchronous>, transform_indices = @transform_3, window_bounds = array<i64: 4, 1>}, {pipeline_mode = #tpu.pipeline_mode<synchronous>, transform_indices = @transform_4, window_bounds = array<i64: 4, 1>}, {pipeline_mode = #tpu.pipeline_mode<synchronous>, transform_indices = @transform_5, window_bounds = array<i64: 4, 1>}, {pipeline_mode = #tpu.pipeline_mode<synchronous>, transform_indices = @transform_6, window_bounds = array<i64: 8, 4>}, {pipeline_mode = #tpu.pipeline_mode<synchronous>, transform_indices = @transform_7, window_bounds = array<i64: 8, 1>}, {pipeline_mode = #tpu.pipeline_mode<synchronous>, transform_indices = @transform_8, window_bounds = array<i64: 4, 8>}, {pipeline_mode = #tpu.pipeline_mode<synchronous>, transform_indices = @transform_9, window_bounds = array<i64: 4, 1>}, {transform_indices = @transform_10, window_bounds = array<i64: 1, 4, 256>}]} {
    %c0 = arith.constant 0 : index
    %c0_0 = arith.constant 0 : index
    %0 = vector.load %arg2[%c0, %c0_0] : memref<2x256xf32, #tpu.memory_space<vmem>>, vector<1x256xf32>
    %c1 = arith.constant 1 : index
    %c0_1 = arith.constant 0 : index
    %1 = vector.load %arg2[%c1, %c0_1] : memref<2x256xf32, #tpu.memory_space<vmem>>, vector<1x256xf32>
    %cst = arith.constant 0.000000e+00 : f32
    %2 = vector.broadcast %cst : f32 to vector<4x256xf32>
    %c0_2 = arith.constant 0 : index
    %c0_3 = arith.constant 0 : index
    %c0_4 = arith.constant 0 : index
    %3 = vector.load %arg1[%c0_2, %c0_3, %c0_4] : memref<1x4x290xf32, #tpu.memory_space<vmem>>, vector<1x4x256xf32>
    %4 = vector.shape_cast %3 : vector<1x4x256xf32> to vector<4x256xf32>
    %5 = vector.broadcast %0 : vector<1x256xf32> to vector<4x256xf32>
    %6 = arith.mulf %4, %5 : vector<4x256xf32>
    %c0_5 = arith.constant 0 : index
    %c0_6 = arith.constant 0 : index
    %7 = vector.load %arg3[%c0_5, %c0_6] : memref<4x9xf32, #tpu.memory_space<vmem>>, vector<4x1xf32>
    %8 = vector.broadcast %7 : vector<4x1xf32> to vector<4x256xf32>
    %9 = arith.mulf %6, %8 : vector<4x256xf32>
    %10 = arith.addf %2, %9 : vector<4x256xf32>
    %c0_7 = arith.constant 0 : index
    %c0_8 = arith.constant 0 : index
    %c1_9 = arith.constant 1 : index
    %11 = vector.load %arg1[%c0_7, %c0_8, %c1_9] : memref<1x4x290xf32, #tpu.memory_space<vmem>>, vector<1x4x256xf32>
    %12 = vector.shape_cast %11 : vector<1x4x256xf32> to vector<4x256xf32>
    %c0_10 = arith.constant 0 : index
    %c1_11 = arith.constant 1 : index
    %13 = vector.load %arg3[%c0_10, %c1_11] : memref<4x9xf32, #tpu.memory_space<vmem>>, vector<4x1xf32>
    %14 = vector.broadcast %13 : vector<4x1xf32> to vector<4x256xf32>
    %15 = arith.mulf %12, %14 : vector<4x256xf32>
    %16 = arith.addf %10, %15 : vector<4x256xf32>
    %c0_12 = arith.constant 0 : index
    %c0_13 = arith.constant 0 : index
    %c2 = arith.constant 2 : index
    %17 = vector.load %arg1[%c0_12, %c0_13, %c2] : memref<1x4x290xf32, #tpu.memory_space<vmem>>, vector<1x4x256xf32>
    %18 = vector.shape_cast %17 : vector<1x4x256xf32> to vector<4x256xf32>
    %19 = vector.broadcast %1 : vector<1x256xf32> to vector<4x256xf32>
    %20 = arith.mulf %18, %19 : vector<4x256xf32>
    %c0_14 = arith.constant 0 : index
    %c2_15 = arith.constant 2 : index
    %21 = vector.load %arg3[%c0_14, %c2_15] : memref<4x9xf32, #tpu.memory_space<vmem>>, vector<4x1xf32>
    %22 = vector.broadcast %21 : vector<4x1xf32> to vector<4x256xf32>
    %23 = arith.mulf %20, %22 : vector<4x256xf32>
    %24 = arith.addf %16, %23 : vector<4x256xf32>
    %c0_16 = arith.constant 0 : index
    %c0_17 = arith.constant 0 : index
    %c16 = arith.constant 16 : index
    %25 = vector.load %arg1[%c0_16, %c0_17, %c16] : memref<1x4x290xf32, #tpu.memory_space<vmem>>, vector<1x4x256xf32>
    %26 = vector.shape_cast %25 : vector<1x4x256xf32> to vector<4x256xf32>
    %27 = vector.broadcast %0 : vector<1x256xf32> to vector<4x256xf32>
    %28 = arith.mulf %26, %27 : vector<4x256xf32>
    %c0_18 = arith.constant 0 : index
    %c3 = arith.constant 3 : index
    %29 = vector.load %arg3[%c0_18, %c3] : memref<4x9xf32, #tpu.memory_space<vmem>>, vector<4x1xf32>
    %30 = vector.broadcast %29 : vector<4x1xf32> to vector<4x256xf32>
    %31 = arith.mulf %28, %30 : vector<4x256xf32>
    %32 = arith.addf %24, %31 : vector<4x256xf32>
    %c0_19 = arith.constant 0 : index
    %c0_20 = arith.constant 0 : index
    %c17 = arith.constant 17 : index
    %33 = vector.load %arg1[%c0_19, %c0_20, %c17] : memref<1x4x290xf32, #tpu.memory_space<vmem>>, vector<1x4x256xf32>
    %34 = vector.shape_cast %33 : vector<1x4x256xf32> to vector<4x256xf32>
    %c0_21 = arith.constant 0 : index
    %c4 = arith.constant 4 : index
    %35 = vector.load %arg3[%c0_21, %c4] : memref<4x9xf32, #tpu.memory_space<vmem>>, vector<4x1xf32>
    %36 = vector.broadcast %35 : vector<4x1xf32> to vector<4x256xf32>
    %37 = arith.mulf %34, %36 : vector<4x256xf32>
    %38 = arith.addf %32, %37 : vector<4x256xf32>
    %c0_22 = arith.constant 0 : index
    %c0_23 = arith.constant 0 : index
    %c18 = arith.constant 18 : index
    %39 = vector.load %arg1[%c0_22, %c0_23, %c18] : memref<1x4x290xf32, #tpu.memory_space<vmem>>, vector<1x4x256xf32>
    %40 = vector.shape_cast %39 : vector<1x4x256xf32> to vector<4x256xf32>
    %41 = vector.broadcast %1 : vector<1x256xf32> to vector<4x256xf32>
    %42 = arith.mulf %40, %41 : vector<4x256xf32>
    %c0_24 = arith.constant 0 : index
    %c5 = arith.constant 5 : index
    %43 = vector.load %arg3[%c0_24, %c5] : memref<4x9xf32, #tpu.memory_space<vmem>>, vector<4x1xf32>
    %44 = vector.broadcast %43 : vector<4x1xf32> to vector<4x256xf32>
    %45 = arith.mulf %42, %44 : vector<4x256xf32>
    %46 = arith.addf %38, %45 : vector<4x256xf32>
    %c0_25 = arith.constant 0 : index
    %c0_26 = arith.constant 0 : index
    %c32 = arith.constant 32 : index
    %47 = vector.load %arg1[%c0_25, %c0_26, %c32] : memref<1x4x290xf32, #tpu.memory_space<vmem>>, vector<1x4x256xf32>
    %48 = vector.shape_cast %47 : vector<1x4x256xf32> to vector<4x256xf32>
    %49 = vector.broadcast %0 : vector<1x256xf32> to vector<4x256xf32>
    %50 = arith.mulf %48, %49 : vector<4x256xf32>
    %c0_27 = arith.constant 0 : index
    %c6 = arith.constant 6 : index
    %51 = vector.load %arg3[%c0_27, %c6] : memref<4x9xf32, #tpu.memory_space<vmem>>, vector<4x1xf32>
    %52 = vector.broadcast %51 : vector<4x1xf32> to vector<4x256xf32>
    %53 = arith.mulf %50, %52 : vector<4x256xf32>
    %54 = arith.addf %46, %53 : vector<4x256xf32>
    %c0_28 = arith.constant 0 : index
    %c0_29 = arith.constant 0 : index
    %c33 = arith.constant 33 : index
    %55 = vector.load %arg1[%c0_28, %c0_29, %c33] : memref<1x4x290xf32, #tpu.memory_space<vmem>>, vector<1x4x256xf32>
    %56 = vector.shape_cast %55 : vector<1x4x256xf32> to vector<4x256xf32>
    %c0_30 = arith.constant 0 : index
    %c7 = arith.constant 7 : index
    %57 = vector.load %arg3[%c0_30, %c7] : memref<4x9xf32, #tpu.memory_space<vmem>>, vector<4x1xf32>
    %58 = vector.broadcast %57 : vector<4x1xf32> to vector<4x256xf32>
    %59 = arith.mulf %56, %58 : vector<4x256xf32>
    %60 = arith.addf %54, %59 : vector<4x256xf32>
    %c0_31 = arith.constant 0 : index
    %c0_32 = arith.constant 0 : index
    %c34 = arith.constant 34 : index
    %61 = vector.load %arg1[%c0_31, %c0_32, %c34] : memref<1x4x290xf32, #tpu.memory_space<vmem>>, vector<1x4x256xf32>
    %62 = vector.shape_cast %61 : vector<1x4x256xf32> to vector<4x256xf32>
    %63 = vector.broadcast %1 : vector<1x256xf32> to vector<4x256xf32>
    %64 = arith.mulf %62, %63 : vector<4x256xf32>
    %c0_33 = arith.constant 0 : index
    %c8 = arith.constant 8 : index
    %65 = vector.load %arg3[%c0_33, %c8] : memref<4x9xf32, #tpu.memory_space<vmem>>, vector<4x1xf32>
    %66 = vector.broadcast %65 : vector<4x1xf32> to vector<4x256xf32>
    %67 = arith.mulf %64, %66 : vector<4x256xf32>
    %68 = arith.addf %60, %67 : vector<4x256xf32>
    %c0_34 = arith.constant 0 : index
    %c0_35 = arith.constant 0 : index
    %69 = vector.load %arg4[%c0_34, %c0_35] : memref<4x1xf32, #tpu.memory_space<vmem>>, vector<4x1xf32>
    %70 = vector.broadcast %69 : vector<4x1xf32> to vector<4x256xf32>
    %71 = arith.addf %68, %70 : vector<4x256xf32>
    %cst_36 = arith.constant dense<0.000000e+00> : vector<4xf32>
    %72 = vector.multi_reduction <add>, %71, %cst_36 [1] : vector<4x256xf32> to vector<4xf32>
    %73 = vector.shape_cast %72 : vector<4xf32> to vector<4x1xf32>
    %cst_37 = arith.constant 3.906250e-03 : f32
    %74 = vector.broadcast %cst_37 : f32 to vector<4x1xf32>
    %75 = arith.mulf %73, %74 : vector<4x1xf32>
    %76 = vector.broadcast %75 : vector<4x1xf32> to vector<4x256xf32>
    %77 = arith.subf %71, %76 : vector<4x256xf32>
    %78 = arith.mulf %77, %77 : vector<4x256xf32>
    %cst_38 = arith.constant dense<0.000000e+00> : vector<4xf32>
    %79 = vector.multi_reduction <add>, %78, %cst_38 [1] : vector<4x256xf32> to vector<4xf32>
    %80 = vector.shape_cast %79 : vector<4xf32> to vector<4x1xf32>
    %cst_39 = arith.constant 3.906250e-03 : f32
    %81 = vector.broadcast %cst_39 : f32 to vector<4x1xf32>
    %82 = arith.mulf %80, %81 : vector<4x1xf32>
    %cst_40 = arith.constant 9.99999974E-6 : f32
    %83 = vector.broadcast %cst_40 : f32 to vector<4x1xf32>
    %84 = arith.addf %82, %83 : vector<4x1xf32>
    %85 = math.rsqrt %84 : vector<4x1xf32>
    %86 = vector.broadcast %85 : vector<4x1xf32> to vector<4x256xf32>
    %87 = arith.mulf %77, %86 : vector<4x256xf32>
    %c0_41 = arith.constant 0 : index
    %c0_42 = arith.constant 0 : index
    %88 = vector.load %arg5[%c0_41, %c0_42] : memref<4x1xf32, #tpu.memory_space<vmem>>, vector<4x1xf32>
    %89 = vector.broadcast %88 : vector<4x1xf32> to vector<4x256xf32>
    %90 = arith.mulf %87, %89 : vector<4x256xf32>
    %c0_43 = arith.constant 0 : index
    %c0_44 = arith.constant 0 : index
    %91 = vector.load %arg6[%c0_43, %c0_44] : memref<4x1xf32, #tpu.memory_space<vmem>>, vector<4x1xf32>
    %92 = vector.broadcast %91 : vector<4x1xf32> to vector<4x256xf32>
    %93 = arith.addf %90, %92 : vector<4x256xf32>
    %cst_45 = arith.constant 0.000000e+00 : f32
    %94 = vector.broadcast %cst_45 : f32 to vector<8x256xf32>
    %c0_46 = arith.constant 0 : index
    %c0_47 = arith.constant 0 : index
    %95 = vector.load %arg7[%c0_46, %c0_47] : memref<8x4xf32, #tpu.memory_space<vmem>>, vector<8x1xf32>
    %96 = vector.extract_strided_slice %93 {offsets = [0, 0], sizes = [1, 256], strides = [1, 1]} : vector<4x256xf32> to vector<1x256xf32>
    %97 = vector.broadcast %95 : vector<8x1xf32> to vector<8x256xf32>
    %98 = vector.broadcast %96 : vector<1x256xf32> to vector<8x256xf32>
    %99 = arith.mulf %97, %98 : vector<8x256xf32>
    %100 = arith.addf %94, %99 : vector<8x256xf32>
    %c0_48 = arith.constant 0 : index
    %c1_49 = arith.constant 1 : index
    %101 = vector.load %arg7[%c0_48, %c1_49] : memref<8x4xf32, #tpu.memory_space<vmem>>, vector<8x1xf32>
    %102 = vector.extract_strided_slice %93 {offsets = [1, 0], sizes = [1, 256], strides = [1, 1]} : vector<4x256xf32> to vector<1x256xf32>
    %103 = vector.broadcast %101 : vector<8x1xf32> to vector<8x256xf32>
    %104 = vector.broadcast %102 : vector<1x256xf32> to vector<8x256xf32>
    %105 = arith.mulf %103, %104 : vector<8x256xf32>
    %106 = arith.addf %100, %105 : vector<8x256xf32>
    %c0_50 = arith.constant 0 : index
    %c2_51 = arith.constant 2 : index
    %107 = vector.load %arg7[%c0_50, %c2_51] : memref<8x4xf32, #tpu.memory_space<vmem>>, vector<8x1xf32>
    %108 = vector.extract_strided_slice %93 {offsets = [2, 0], sizes = [1, 256], strides = [1, 1]} : vector<4x256xf32> to vector<1x256xf32>
    %109 = vector.broadcast %107 : vector<8x1xf32> to vector<8x256xf32>
    %110 = vector.broadcast %108 : vector<1x256xf32> to vector<8x256xf32>
    %111 = arith.mulf %109, %110 : vector<8x256xf32>
    %112 = arith.addf %106, %111 : vector<8x256xf32>
    %c0_52 = arith.constant 0 : index
    %c3_53 = arith.constant 3 : index
    %113 = vector.load %arg7[%c0_52, %c3_53] : memref<8x4xf32, #tpu.memory_space<vmem>>, vector<8x1xf32>
    %114 = vector.extract_strided_slice %93 {offsets = [3, 0], sizes = [1, 256], strides = [1, 1]} : vector<4x256xf32> to vector<1x256xf32>
    %115 = vector.broadcast %113 : vector<8x1xf32> to vector<8x256xf32>
    %116 = vector.broadcast %114 : vector<1x256xf32> to vector<8x256xf32>
    %117 = arith.mulf %115, %116 : vector<8x256xf32>
    %118 = arith.addf %112, %117 : vector<8x256xf32>
    %c0_54 = arith.constant 0 : index
    %c0_55 = arith.constant 0 : index
    %119 = vector.load %arg8[%c0_54, %c0_55] : memref<8x1xf32, #tpu.memory_space<vmem>>, vector<8x1xf32>
    %120 = vector.broadcast %119 : vector<8x1xf32> to vector<8x256xf32>
    %121 = arith.addf %118, %120 : vector<8x256xf32>
    %cst_56 = arith.constant 5.000000e-01 : f32
    %122 = vector.broadcast %cst_56 : f32 to vector<8x256xf32>
    %123 = arith.mulf %122, %121 : vector<8x256xf32>
    %cst_57 = arith.constant 0.707106769 : f32
    %124 = vector.broadcast %cst_57 : f32 to vector<8x256xf32>
    %125 = arith.mulf %121, %124 : vector<8x256xf32>
    %cst_58 = arith.constant 0.000000e+00 : f32
    %126 = vector.broadcast %cst_58 : f32 to vector<8x256xf32>
    %127 = arith.cmpf oge, %125, %126 : vector<8x256xf32>
    %cst_59 = arith.constant 1.000000e+00 : f32
    %cst_60 = arith.constant -1.000000e+00 : f32
    %128 = vector.broadcast %cst_59 : f32 to vector<8x256xf32>
    %129 = vector.broadcast %cst_60 : f32 to vector<8x256xf32>
    %130 = arith.select %127, %128, %129 : vector<8x256xi1>, vector<8x256xf32>
    %131 = math.absf %125 : vector<8x256xf32>
    %cst_61 = arith.constant 0.327591091 : f32
    %132 = vector.broadcast %cst_61 : f32 to vector<8x256xf32>
    %133 = arith.mulf %132, %131 : vector<8x256xf32>
    %cst_62 = arith.constant 1.000000e+00 : f32
    %134 = vector.broadcast %cst_62 : f32 to vector<8x256xf32>
    %135 = arith.addf %134, %133 : vector<8x256xf32>
    %136 = tpu.reciprocal %135 : vector<8x256xf32> -> vector<8x256xf32>
    %cst_63 = arith.constant 1.06140542 : f32
    %137 = vector.broadcast %cst_63 : f32 to vector<8x256xf32>
    %138 = arith.mulf %136, %137 : vector<8x256xf32>
    %cst_64 = arith.constant -1.45315206 : f32
    %139 = vector.broadcast %cst_64 : f32 to vector<8x256xf32>
    %140 = arith.addf %139, %138 : vector<8x256xf32>
    %141 = arith.mulf %136, %140 : vector<8x256xf32>
    %cst_65 = arith.constant 1.42141378 : f32
    %142 = vector.broadcast %cst_65 : f32 to vector<8x256xf32>
    %143 = arith.addf %142, %141 : vector<8x256xf32>
    %144 = arith.mulf %136, %143 : vector<8x256xf32>
    %cst_66 = arith.constant -0.284496725 : f32
    %145 = vector.broadcast %cst_66 : f32 to vector<8x256xf32>
    %146 = arith.addf %145, %144 : vector<8x256xf32>
    %147 = arith.mulf %136, %146 : vector<8x256xf32>
    %cst_67 = arith.constant 0.254829586 : f32
    %148 = vector.broadcast %cst_67 : f32 to vector<8x256xf32>
    %149 = arith.addf %148, %147 : vector<8x256xf32>
    %150 = arith.mulf %136, %149 : vector<8x256xf32>
    %cst_68 = arith.constant 0.000000e+00 : f32
    %151 = vector.broadcast %cst_68 : f32 to vector<8x256xf32>
    %152 = arith.subf %151, %131 : vector<8x256xf32>
    %153 = arith.mulf %152, %131 : vector<8x256xf32>
    %154 = math.exp %153 : vector<8x256xf32>
    %155 = arith.mulf %150, %154 : vector<8x256xf32>
    %cst_69 = arith.constant 1.000000e+00 : f32
    %156 = vector.broadcast %cst_69 : f32 to vector<8x256xf32>
    %157 = arith.subf %156, %155 : vector<8x256xf32>
    %158 = arith.mulf %130, %157 : vector<8x256xf32>
    %cst_70 = arith.constant 1.000000e+00 : f32
    %159 = vector.broadcast %cst_70 : f32 to vector<8x256xf32>
    %160 = arith.addf %159, %158 : vector<8x256xf32>
    %161 = arith.mulf %123, %160 : vector<8x256xf32>
    %c0_71 = arith.constant 0 : index
    %c0_72 = arith.constant 0 : index
    %c17_73 = arith.constant 17 : index
    %162 = vector.load %arg1[%c0_71, %c0_72, %c17_73] : memref<1x4x290xf32, #tpu.memory_space<vmem>>, vector<1x4x256xf32>
    %163 = vector.shape_cast %162 : vector<1x4x256xf32> to vector<4x256xf32>
    %c0_74 = arith.constant 0 : index
    %c0_75 = arith.constant 0 : index
    %164 = vector.load %arg10[%c0_74, %c0_75] : memref<4x1xf32, #tpu.memory_space<vmem>>, vector<4x1xf32>
    %165 = vector.broadcast %164 : vector<4x1xf32> to vector<4x256xf32>
    %166 = arith.addf %163, %165 : vector<4x256xf32>
    %c0_76 = arith.constant 0 : index
    %c0_77 = arith.constant 0 : index
    %167 = vector.load %arg9[%c0_76, %c0_77] : memref<4x8xf32, #tpu.memory_space<vmem>>, vector<4x1xf32>
    %168 = vector.extract_strided_slice %161 {offsets = [0, 0], sizes = [1, 256], strides = [1, 1]} : vector<8x256xf32> to vector<1x256xf32>
    %169 = vector.broadcast %167 : vector<4x1xf32> to vector<4x256xf32>
    %170 = vector.broadcast %168 : vector<1x256xf32> to vector<4x256xf32>
    %171 = arith.mulf %169, %170 : vector<4x256xf32>
    %172 = arith.addf %166, %171 : vector<4x256xf32>
    %c0_78 = arith.constant 0 : index
    %c1_79 = arith.constant 1 : index
    %173 = vector.load %arg9[%c0_78, %c1_79] : memref<4x8xf32, #tpu.memory_space<vmem>>, vector<4x1xf32>
    %174 = vector.extract_strided_slice %161 {offsets = [1, 0], sizes = [1, 256], strides = [1, 1]} : vector<8x256xf32> to vector<1x256xf32>
    %175 = vector.broadcast %173 : vector<4x1xf32> to vector<4x256xf32>
    %176 = vector.broadcast %174 : vector<1x256xf32> to vector<4x256xf32>
    %177 = arith.mulf %175, %176 : vector<4x256xf32>
    %178 = arith.addf %172, %177 : vector<4x256xf32>
    %c0_80 = arith.constant 0 : index
    %c2_81 = arith.constant 2 : index
    %179 = vector.load %arg9[%c0_80, %c2_81] : memref<4x8xf32, #tpu.memory_space<vmem>>, vector<4x1xf32>
    %180 = vector.extract_strided_slice %161 {offsets = [2, 0], sizes = [1, 256], strides = [1, 1]} : vector<8x256xf32> to vector<1x256xf32>
    %181 = vector.broadcast %179 : vector<4x1xf32> to vector<4x256xf32>
    %182 = vector.broadcast %180 : vector<1x256xf32> to vector<4x256xf32>
    %183 = arith.mulf %181, %182 : vector<4x256xf32>
    %184 = arith.addf %178, %183 : vector<4x256xf32>
    %c0_82 = arith.constant 0 : index
    %c3_83 = arith.constant 3 : index
    %185 = vector.load %arg9[%c0_82, %c3_83] : memref<4x8xf32, #tpu.memory_space<vmem>>, vector<4x1xf32>
    %186 = vector.extract_strided_slice %161 {offsets = [3, 0], sizes = [1, 256], strides = [1, 1]} : vector<8x256xf32> to vector<1x256xf32>
    %187 = vector.broadcast %185 : vector<4x1xf32> to vector<4x256xf32>
    %188 = vector.broadcast %186 : vector<1x256xf32> to vector<4x256xf32>
    %189 = arith.mulf %187, %188 : vector<4x256xf32>
    %190 = arith.addf %184, %189 : vector<4x256xf32>
    %c0_84 = arith.constant 0 : index
    %c4_85 = arith.constant 4 : index
    %191 = vector.load %arg9[%c0_84, %c4_85] : memref<4x8xf32, #tpu.memory_space<vmem>>, vector<4x1xf32>
    %192 = vector.extract_strided_slice %161 {offsets = [4, 0], sizes = [1, 256], strides = [1, 1]} : vector<8x256xf32> to vector<1x256xf32>
    %193 = vector.broadcast %191 : vector<4x1xf32> to vector<4x256xf32>
    %194 = vector.broadcast %192 : vector<1x256xf32> to vector<4x256xf32>
    %195 = arith.mulf %193, %194 : vector<4x256xf32>
    %196 = arith.addf %190, %195 : vector<4x256xf32>
    %c0_86 = arith.constant 0 : index
    %c5_87 = arith.constant 5 : index
    %197 = vector.load %arg9[%c0_86, %c5_87] : memref<4x8xf32, #tpu.memory_space<vmem>>, vector<4x1xf32>
    %198 = vector.extract_strided_slice %161 {offsets = [5, 0], sizes = [1, 256], strides = [1, 1]} : vector<8x256xf32> to vector<1x256xf32>
    %199 = vector.broadcast %197 : vector<4x1xf32> to vector<4x256xf32>
    %200 = vector.broadcast %198 : vector<1x256xf32> to vector<4x256xf32>
    %201 = arith.mulf %199, %200 : vector<4x256xf32>
    %202 = arith.addf %196, %201 : vector<4x256xf32>
    %c0_88 = arith.constant 0 : index
    %c6_89 = arith.constant 6 : index
    %203 = vector.load %arg9[%c0_88, %c6_89] : memref<4x8xf32, #tpu.memory_space<vmem>>, vector<4x1xf32>
    %204 = vector.extract_strided_slice %161 {offsets = [6, 0], sizes = [1, 256], strides = [1, 1]} : vector<8x256xf32> to vector<1x256xf32>
    %205 = vector.broadcast %203 : vector<4x1xf32> to vector<4x256xf32>
    %206 = vector.broadcast %204 : vector<1x256xf32> to vector<4x256xf32>
    %207 = arith.mulf %205, %206 : vector<4x256xf32>
    %208 = arith.addf %202, %207 : vector<4x256xf32>
    %c0_90 = arith.constant 0 : index
    %c7_91 = arith.constant 7 : index
    %209 = vector.load %arg9[%c0_90, %c7_91] : memref<4x8xf32, #tpu.memory_space<vmem>>, vector<4x1xf32>
    %210 = vector.extract_strided_slice %161 {offsets = [7, 0], sizes = [1, 256], strides = [1, 1]} : vector<8x256xf32> to vector<1x256xf32>
    %211 = vector.broadcast %209 : vector<4x1xf32> to vector<4x256xf32>
    %212 = vector.broadcast %210 : vector<1x256xf32> to vector<4x256xf32>
    %213 = arith.mulf %211, %212 : vector<4x256xf32>
    %214 = arith.addf %208, %213 : vector<4x256xf32>
    %c0_92 = arith.constant 0 : index
    %c0_93 = arith.constant 0 : index
    %c0_94 = arith.constant 0 : index
    %215 = vector.load %arg11[%c0_92, %c0_93, %c0_94] : memref<1x4x256xf32, #tpu.memory_space<vmem>>, vector<1x4x256xf32>
    %216 = vector.shape_cast %215 : vector<1x4x256xf32> to vector<4x256xf32>
    %217 = vector.shape_cast %214 : vector<4x256xf32> to vector<1x4x256xf32>
    tpu.vector_store %arg11[%c0_92, %c0_93, %c0_94], %217 {strides = array<i32>} : memref<1x4x256xf32, #tpu.memory_space<vmem>>, vector<1x4x256xf32>,
    return
  }
  func.func @transform_0(%arg0: i32) -> (i32, i32, i32) {
    %c0_i32 = arith.constant 0 : i32
    %c0_i32_0 = arith.constant 0 : i32
    %c0_i32_1 = arith.constant 0 : i32
    return %arg0, %c0_i32, %c0_i32_0 : i32, i32, i32
  }
  func.func @transform_1(%arg0: i32) -> (i32, i32) {
    %c0_i32 = arith.constant 0 : i32
    %c0_i32_0 = arith.constant 0 : i32
    %c0_i32_1 = arith.constant 0 : i32
    return %c0_i32, %c0_i32_0 : i32, i32
  }
  func.func @transform_2(%arg0: i32) -> (i32, i32) {
    %c0_i32 = arith.constant 0 : i32
    %c0_i32_0 = arith.constant 0 : i32
    %c0_i32_1 = arith.constant 0 : i32
    return %c0_i32, %c0_i32_0 : i32, i32
  }
  func.func @transform_3(%arg0: i32) -> (i32, i32) {
    %c0_i32 = arith.constant 0 : i32
    %c0_i32_0 = arith.constant 0 : i32
    %c0_i32_1 = arith.constant 0 : i32
    return %c0_i32, %c0_i32_0 : i32, i32
  }
  func.func @transform_4(%arg0: i32) -> (i32, i32) {
    %c0_i32 = arith.constant 0 : i32
    %c0_i32_0 = arith.constant 0 : i32
    %c0_i32_1 = arith.constant 0 : i32
    return %c0_i32, %c0_i32_0 : i32, i32
  }
  func.func @transform_5(%arg0: i32) -> (i32, i32) {
    %c0_i32 = arith.constant 0 : i32
    %c0_i32_0 = arith.constant 0 : i32
    %c0_i32_1 = arith.constant 0 : i32
    return %c0_i32, %c0_i32_0 : i32, i32
  }
  func.func @transform_6(%arg0: i32) -> (i32, i32) {
    %c0_i32 = arith.constant 0 : i32
    %c0_i32_0 = arith.constant 0 : i32
    %c0_i32_1 = arith.constant 0 : i32
    return %c0_i32, %c0_i32_0 : i32, i32
  }
  func.func @transform_7(%arg0: i32) -> (i32, i32) {
    %c0_i32 = arith.constant 0 : i32
    %c0_i32_0 = arith.constant 0 : i32
    %c0_i32_1 = arith.constant 0 : i32
    return %c0_i32, %c0_i32_0 : i32, i32
  }
  func.func @transform_8(%arg0: i32) -> (i32, i32) {
    %c0_i32 = arith.constant 0 : i32
    %c0_i32_0 = arith.constant 0 : i32
    %c0_i32_1 = arith.constant 0 : i32
    return %c0_i32, %c0_i32_0 : i32, i32
  }
  func.func @transform_9(%arg0: i32) -> (i32, i32) {
    %c0_i32 = arith.constant 0 : i32
    %c0_i32_0 = arith.constant 0 : i32
    %c0_i32_1 = arith.constant 0 : i32
    return %c0_i32, %c0_i32_0 : i32, i32
  }
  func.func @transform_10(%arg0: i32) -> (i32, i32, i32) {
    %c0_i32 = arith.constant 0 : i32
    %c0_i32_0 = arith.constant 0 : i32
    %c0_i32_1 = arith.constant 0 : i32
    return %arg0, %c0_i32, %c0_i32_0 : i32, i32, i32
  }
}

</mosaic_0001>

<llo_original>
// kernel: tpu_custom_call.1
$region0: #{tpu_custom_call.1}
  #allocation0 [shape = 'u32[]', space=smem, size = 0x4, offset = 0x4, fixed_abs, tag = 'smem constant byte address 0x4 - core index']
  #allocation1 [shape = 'u32[144,128]{1,0:T(1,128)}', space=vmem, size = 0x12000, scoped, tag = 'internal scratch']
  %s0 = inlined_call_operand.vmem [shape: f32[2,4,290], index: 0, kind: input, shape index: {}]
  %s1 = inlined_call_operand.vmem [shape: f32[2,256], index: 1, kind: input, shape index: {}]
  %s2 = inlined_call_operand.vmem [shape: f32[4,9], index: 2, kind: input, shape index: {}]
  %s3 = inlined_call_operand.vmem [shape: f32[4,1], index: 3, kind: input, shape index: {}]
  %s4 = inlined_call_operand.vmem [shape: f32[4,1], index: 4, kind: input, shape index: {}]
  %s5 = inlined_call_operand.vmem [shape: f32[4,1], index: 5, kind: input, shape index: {}]
  %s6 = inlined_call_operand.vmem [shape: f32[8,4], index: 6, kind: input, shape index: {}]
  %s7 = inlined_call_operand.vmem [shape: f32[8,1], index: 7, kind: input, shape index: {}]
  %s8 = inlined_call_operand.vmem [shape: f32[4,8], index: 8, kind: input, shape index: {}]
  %s9 = inlined_call_operand.vmem [shape: f32[4,1], index: 9, kind: input, shape index: {}]
  %s10 = inlined_call_operand.hbm [shape: f32[2,4,256], index: 10, kind: output, shape index: {}]
  %s11 = sld [smem:[#allocation0]]
  $region73: #{tpu_custom_call.1} parent=0
    _
  %s13 = ssub.s32 1, %s11
  %s14 = scalar_select 0, %s13, %s11
  $region1: #{tpu_custom_call.1} parent=0
    #allocation2 [shape = 'u8[8192]{0}', space=vmem, size = 0x2000, scoped, tag = 'output window, operand 0']
    #allocation3 [shape = 's32[2]{0}', space=sflag, size = 0x8, scoped, tag = 'scoped memory for tpu_custom_call.1']
    %15 = vsyncpa [#allocation3], 0
    %s16 = scalar_lea.sflag [#allocation3], 1
    %17 = vsyncpa %s16, 0
    loop: start=0, step=1, limit=4
    $region2: #{tpu_custom_call.1} parent=1 // loop_pre_header
      _
    $region3: #{tpu_custom_call.1} parent=1 // loop_header
      %s19 = sphi 0, %s23
      %p20 = scmp.ge.s32.totalorder %s19, 4
      %s29 = sphi 0, %s31
      %s32 = sphi 0, %s29
      %s33 = sphi 0, %s32
      %s49 = sphi 0, %s33
      %s53 = sphi 0, %s53
      %s55 = sphi 0, %s53
      %s56 = sphi 0, %s55
      %s70 = sphi 0, %s56
      %s74 = sphi 0, %s74
      %s76 = sphi 0, %s74
      %s77 = sphi 0, %s76
      %s91 = sphi 0, %s77
      %s95 = sphi 0, %s95
      %s97 = sphi 0, %s95
      %s98 = sphi 0, %s97
      %s112 = sphi 0, %s98
      %s116 = sphi 0, %s116
      %s118 = sphi 0, %s116
      %s119 = sphi 0, %s118
      %s133 = sphi 0, %s119
      %s137 = sphi 0, %s137
      %s139 = sphi 0, %s137
      %s140 = sphi 0, %s139
      %s154 = sphi 0, %s140
      %s158 = sphi 0, %s158
      %s160 = sphi 0, %s158
      %s161 = sphi 0, %s160
      %s175 = sphi 0, %s161
      %s179 = sphi 0, %s179
      %s181 = sphi 0, %s179
      %s182 = sphi 0, %s181
      %s196 = sphi 0, %s182
      %s200 = sphi 0, %s200
      %s202 = sphi 0, %s200
      %s203 = sphi 0, %s202
      %s217 = sphi 0, %s203
      %s221 = sphi 0, %s221
      %s223 = sphi 0, %s221
      %s224 = sphi 0, %s223
      %s238 = sphi 0, %s224
      %s244 = sphi 0, %s246
      %s247 = sphi 0, %s244
      %s248 = sphi 0, %s247
      %s264 = sphi 0, %s248
    $region4: #{tpu_custom_call.1} parent=1 // loop_header_branch
      %22 = sbr.rel (%p20) target = $region8
    $region5: #{tpu_custom_call.1} parent=1 // loop_body
      %s24 = ssub.s32 %s19, 1
      %s25 = ssub.s32 %s19, 2
      %s26 = sadd.s32 %s19, 1
      %s27 = ssub.s32 %s19, %s26
      %p28 = scmp.eq.s32.totalorder %s27, 0
      %s30 = sadd.s32 %s29, 1
      %s31 = scalar_select %p28, %s29, %s30
      %p34 = pneg %p28
      %p35 = scmp.eq.s32.totalorder %s19, 1
      %p36 = por %p34, %p35
      %p37 = scmp.ne.s32.totalorder %s29, %s32
      %p38 = scmp.eq.s32.totalorder %s19, 0
      %p39 = por %p37, %p38
      %p40 = scmp.ne.s32.totalorder %s29, %s32
      %p41 = scmp.eq.s32.totalorder %s24, 1
      %p42 = por %p40, %p41
      %p43 = scmp.ne.s32.totalorder %s32, %s33
      %p44 = scmp.eq.s32.totalorder %s24, 0
      %p45 = por %p43, %p44
      %p46 = scmp.ne.s32.totalorder %s32, %s33
      %p47 = scmp.eq.s32.totalorder %s25, 1
      %p48 = por %p46, %p47
      %p50 = scmp.ne.s32.totalorder %s33, %s49
      %p51 = scmp.eq.s32.totalorder %s25, 0
      %p52 = por %p50, %p51
      %s54 = sadd.s32 %s53, 1
      %p57 = scmp.eq.s32.totalorder %s19, 1
      %p58 = scmp.ne.s32.totalorder %s53, %s55
      %p59 = scmp.eq.s32.totalorder %s19, 0
      %p60 = por %p58, %p59
      %p61 = scmp.ne.s32.totalorder %s53, %s55
      %p62 = scmp.eq.s32.totalorder %s24, 1
      %p63 = por %p61, %p62
      %p64 = scmp.ne.s32.totalorder %s55, %s56
      %p65 = scmp.eq.s32.totalorder %s24, 0
      %p66 = por %p64, %p65
      %p67 = scmp.ne.s32.totalorder %s55, %s56
      %p68 = scmp.eq.s32.totalorder %s25, 1
      %p69 = por %p67, %p68
      %p71 = scmp.ne.s32.totalorder %s56, %s70
      %p72 = scmp.eq.s32.totalorder %s25, 0
      %p73 = por %p71, %p72
      %s75 = sadd.s32 %s74, 1
      %p78 = scmp.eq.s32.totalorder %s19, 1
      %p79 = scmp.ne.s32.totalorder %s74, %s76
      %p80 = scmp.eq.s32.totalorder %s19, 0
      %p81 = por %p79, %p80
      %p82 = scmp.ne.s32.totalorder %s74, %s76
      %p83 = scmp.eq.s32.totalorder %s24, 1
      %p84 = por %p82, %p83
      %p85 = scmp.ne.s32.totalorder %s76, %s77
      %p86 = scmp.eq.s32.totalorder %s24, 0
      %p87 = por %p85, %p86
      %p88 = scmp.ne.s32.totalorder %s76, %s77
      %p89 = scmp.eq.s32.totalorder %s25, 1
      %p90 = por %p88, %p89
      %p92 = scmp.ne.s32.totalorder %s77, %s91
      %p93 = scmp.eq.s32.totalorder %s25, 0
      %p94 = por %p92, %p93
      %s96 = sadd.s32 %s95, 1
      %p99 = scmp.eq.s32.totalorder %s19, 1
      %p100 = scmp.ne.s32.totalorder %s95, %s97
      %p101 = scmp.eq.s32.totalorder %s19, 0
      %p102 = por %p100, %p101
      %p103 = scmp.ne.s32.totalorder %s95, %s97
      %p104 = scmp.eq.s32.totalorder %s24, 1
      %p105 = por %p103, %p104
      %p106 = scmp.ne.s32.totalorder %s97, %s98
      %p107 = scmp.eq.s32.totalorder %s24, 0
      %p108 = por %p106, %p107
      %p109 = scmp.ne.s32.totalorder %s97, %s98
      %p110 = scmp.eq.s32.totalorder %s25, 1
      %p111 = por %p109, %p110
      %p113 = scmp.ne.s32.totalorder %s98, %s112
      %p114 = scmp.eq.s32.totalorder %s25, 0
      %p115 = por %p113, %p114
      %s117 = sadd.s32 %s116, 1
      %p120 = scmp.eq.s32.totalorder %s19, 1
      %p121 = scmp.ne.s32.totalorder %s116, %s118
      %p122 = scmp.eq.s32.totalorder %s19, 0
      %p123 = por %p121, %p122
      %p124 = scmp.ne.s32.totalorder %s116, %s118
      %p125 = scmp.eq.s32.totalorder %s24, 1
      %p126 = por %p124, %p125
      %p127 = scmp.ne.s32.totalorder %s118, %s119
      %p128 = scmp.eq.s32.totalorder %s24, 0
      %p129 = por %p127, %p128
      %p130 = scmp.ne.s32.totalorder %s118, %s119
      %p131 = scmp.eq.s32.totalorder %s25, 1
      %p132 = por %p130, %p131
      %p134 = scmp.ne.s32.totalorder %s119, %s133
      %p135 = scmp.eq.s32.totalorder %s25, 0
      %p136 = por %p134, %p135
      %s138 = sadd.s32 %s137, 1
      %p141 = scmp.eq.s32.totalorder %s19, 1
      %p142 = scmp.ne.s32.totalorder %s137, %s139
      %p143 = scmp.eq.s32.totalorder %s19, 0
      %p144 = por %p142, %p143
      %p145 = scmp.ne.s32.totalorder %s137, %s139
      %p146 = scmp.eq.s32.totalorder %s24, 1
      %p147 = por %p145, %p146
      %p148 = scmp.ne.s32.totalorder %s139, %s140
      %p149 = scmp.eq.s32.totalorder %s24, 0
      %p150 = por %p148, %p149
      %p151 = scmp.ne.s32.totalorder %s139, %s140
      %p152 = scmp.eq.s32.totalorder %s25, 1
      %p153 = por %p151, %p152
      %p155 = scmp.ne.s32.totalorder %s140, %s154
      %p156 = scmp.eq.s32.totalorder %s25, 0
      %p157 = por %p155, %p156
      %s159 = sadd.s32 %s158, 1
      %p162 = scmp.eq.s32.totalorder %s19, 1
      %p163 = scmp.ne.s32.totalorder %s158, %s160
      %p164 = scmp.eq.s32.totalorder %s19, 0
      %p165 = por %p163, %p164
      %p166 = scmp.ne.s32.totalorder %s158, %s160
      %p167 = scmp.eq.s32.totalorder %s24, 1
      %p168 = por %p166, %p167
      %p169 = scmp.ne.s32.totalorder %s160, %s161
      %p170 = scmp.eq.s32.totalorder %s24, 0
      %p171 = por %p169, %p170
      %p172 = scmp.ne.s32.totalorder %s160, %s161
      %p173 = scmp.eq.s32.totalorder %s25, 1
      %p174 = por %p172, %p173
      %p176 = scmp.ne.s32.totalorder %s161, %s175
      %p177 = scmp.eq.s32.totalorder %s25, 0
      %p178 = por %p176, %p177
      %s180 = sadd.s32 %s179, 1
      %p183 = scmp.eq.s32.totalorder %s19, 1
      %p184 = scmp.ne.s32.totalorder %s179, %s181
      %p185 = scmp.eq.s32.totalorder %s19, 0
      %p186 = por %p184, %p185
      %p187 = scmp.ne.s32.totalorder %s179, %s181
      %p188 = scmp.eq.s32.totalorder %s24, 1
      %p189 = por %p187, %p188
      %p190 = scmp.ne.s32.totalorder %s181, %s182
      %p191 = scmp.eq.s32.totalorder %s24, 0
      %p192 = por %p190, %p191
      %p193 = scmp.ne.s32.totalorder %s181, %s182
      %p194 = scmp.eq.s32.totalorder %s25, 1
      %p195 = por %p193, %p194
      %p197 = scmp.ne.s32.totalorder %s182, %s196
      %p198 = scmp.eq.s32.totalorder %s25, 0
      %p199 = por %p197, %p198
      %s201 = sadd.s32 %s200, 1
      %p204 = scmp.eq.s32.totalorder %s19, 1
      %p205 = scmp.ne.s32.totalorder %s200, %s202
      %p206 = scmp.eq.s32.totalorder %s19, 0
      %p207 = por %p205, %p206
      %p208 = scmp.ne.s32.totalorder %s200, %s202
      %p209 = scmp.eq.s32.totalorder %s24, 1
      %p210 = por %p208, %p209
      %p211 = scmp.ne.s32.totalorder %s202, %s203
      %p212 = scmp.eq.s32.totalorder %s24, 0
      %p213 = por %p211, %p212
      %p214 = scmp.ne.s32.totalorder %s202, %s203
      %p215 = scmp.eq.s32.totalorder %s25, 1
      %p216 = por %p214, %p215
      %p218 = scmp.ne.s32.totalorder %s203, %s217
      %p219 = scmp.eq.s32.totalorder %s25, 0
      %p220 = por %p218, %p219
      %s222 = sadd.s32 %s221, 1
      %p225 = scmp.eq.s32.totalorder %s19, 1
      %p226 = scmp.ne.s32.totalorder %s221, %s223
      %p227 = scmp.eq.s32.totalorder %s19, 0
      %p228 = por %p226, %p227
      %p229 = scmp.ne.s32.totalorder %s221, %s223
      %p230 = scmp.eq.s32.totalorder %s24, 1
      %p231 = por %p229, %p230
      %p232 = scmp.ne.s32.totalorder %s223, %s224
      %p233 = scmp.eq.s32.totalorder %s24, 0
      %p234 = por %p232, %p233
      %p235 = scmp.ne.s32.totalorder %s223, %s224
      %p236 = scmp.eq.s32.totalorder %s25, 1
      %p237 = por %p235, %p236
      %p239 = scmp.ne.s32.totalorder %s224, %s238
      %p240 = scmp.eq.s32.totalorder %s25, 0
      %p241 = por %p239, %p240
      %s242 = ssub.s32 %s19, %s26
      %p243 = scmp.eq.s32.totalorder %s242, 0
      %s245 = sadd.s32 %s244, 1
      %s246 = scalar_select %p243, %s244, %s245
      %p249 = pneg %p243
      %p250 = scmp.eq.s32.totalorder %s19, 1
      %p251 = por %p249, %p250
      %p252 = scmp.ne.s32.totalorder %s244, %s247
      %p253 = scmp.eq.s32.totalorder %s19, 0
      %p254 = por %p252, %p253
      %p255 = scmp.ne.s32.totalorder %s244, %s247
      %p256 = scmp.eq.s32.totalorder %s24, 1
      %p257 = por %p255, %p256
      %p258 = scmp.ne.s32.totalorder %s247, %s248
      %p259 = scmp.eq.s32.totalorder %s24, 0
      %p260 = por %p258, %p259
      %p261 = scmp.ne.s32.totalorder %s247, %s248
      %p262 = scmp.eq.s32.totalorder %s25, 1
      %p263 = por %p261, %p262
      %p265 = scmp.ne.s32.totalorder %s248, %s264
      %p266 = scmp.eq.s32.totalorder %s25, 0
      %p267 = por %p265, %p266
      %p268 = scmp.le.s32.totalorder 1, %s19
      %p269 = scmp.lt.s32.totalorder %s19, 3
      %p270 = pnand %p268, %p269
      %p271 = pneg %p270
      // Predicated region
      $region9: #{tpu_custom_call.1} parent=5 // pred_check
        _
      $region10: #{tpu_custom_call.1} parent=5 // pred_check_branch
        %273 = sbr.rel (%p270) target = $region12
      $region11: #{tpu_custom_call.1} parent=5 // pred_region
        %s274 = ssub.s32 %s19, 1
        // Predicated region
        $region13: #{tpu_custom_call.1} parent=11 // pred_check
          %p275 = pneg %p66
        $region14: #{tpu_custom_call.1} parent=11 // pred_check_branch
          %277 = sbr.rel (%p275) target = $region16
        $region15: #{tpu_custom_call.1} parent=11 // pred_region
          _
        $region16: #{tpu_custom_call.1} parent=11 // pred_fallthru
          _
        // Predicated region
        $region17: #{tpu_custom_call.1} parent=11 // pred_check
          %p278 = pneg %p87
        $region18: #{tpu_custom_call.1} parent=11 // pred_check_branch
          %280 = sbr.rel (%p278) target = $region20
        $region19: #{tpu_custom_call.1} parent=11 // pred_region
          _
        $region20: #{tpu_custom_call.1} parent=11 // pred_fallthru
          _
        // Predicated region
        $region21: #{tpu_custom_call.1} parent=11 // pred_check
          %p281 = pneg %p108
        $region22: #{tpu_custom_call.1} parent=11 // pred_check_branch
          %283 = sbr.rel (%p281) target = $region24
        $region23: #{tpu_custom_call.1} parent=11 // pred_region
          _
        $region24: #{tpu_custom_call.1} parent=11 // pred_fallthru
          _
        // Predicated region
        $region25: #{tpu_custom_call.1} parent=11 // pred_check
          %p284 = pneg %p129
        $region26: #{tpu_custom_call.1} parent=11 // pred_check_branch
          %286 = sbr.rel (%p284) target = $region28
        $region27: #{tpu_custom_call.1} parent=11 // pred_region
          _
        $region28: #{tpu_custom_call.1} parent=11 // pred_fallthru
          _
        // Predicated region
        $region29: #{tpu_custom_call.1} parent=11 // pred_check
          %p287 = pneg %p150
        $region30: #{tpu_custom_call.1} parent=11 // pred_check_branch
          %289 = sbr.rel (%p287) target = $region32
        $region31: #{tpu_custom_call.1} parent=11 // pred_region
          _
        $region32: #{tpu_custom_call.1} parent=11 // pred_fallthru
          _
        // Predicated region
        $region33: #{tpu_custom_call.1} parent=11 // pred_check
          %p290 = pneg %p171
        $region34: #{tpu_custom_call.1} parent=11 // pred_check_branch
          %292 = sbr.rel (%p290) target = $region36
        $region35: #{tpu_custom_call.1} parent=11 // pred_region
          _
        $region36: #{tpu_custom_call.1} parent=11 // pred_fallthru
          _
        // Predicated region
        $region37: #{tpu_custom_call.1} parent=11 // pred_check
          %p293 = pneg %p192
        $region38: #{tpu_custom_call.1} parent=11 // pred_check_branch
          %295 = sbr.rel (%p293) target = $region40
        $region39: #{tpu_custom_call.1} parent=11 // pred_region
          _
        $region40: #{tpu_custom_call.1} parent=11 // pred_fallthru
          _
        // Predicated region
        $region41: #{tpu_custom_call.1} parent=11 // pred_check
          %p296 = pneg %p213
        $region42: #{tpu_custom_call.1} parent=11 // pred_check_branch
          %298 = sbr.rel (%p296) target = $region44
        $region43: #{tpu_custom_call.1} parent=11 // pred_region
          _
        $region44: #{tpu_custom_call.1} parent=11 // pred_fallthru
          _
        // Predicated region
        $region45: #{tpu_custom_call.1} parent=11 // pred_check
          %p299 = pneg %p234
        $region46: #{tpu_custom_call.1} parent=11 // pred_check_branch
          %301 = sbr.rel (%p299) target = $region48
        $region47: #{tpu_custom_call.1} parent=11 // pred_region
          _
        $region48: #{tpu_custom_call.1} parent=11 // pred_fallthru
          _
      $region12: #{tpu_custom_call.1} parent=5 // pred_fallthru
        _
      %p302 = scmp.lt.s32.totalorder %s19, 2
      // Predicated region
      $region49: #{tpu_custom_call.1} parent=5 // pred_check
        %p303 = pneg %p302
      $region50: #{tpu_custom_call.1} parent=5 // pred_check_branch
        %305 = sbr.rel (%p303) target = $region52
      $region51: #{tpu_custom_call.1} parent=5 // pred_region
        // Predicated region
        $region53: #{tpu_custom_call.1} parent=51 // pred_check
          %p306 = pneg %p39
        $region54: #{tpu_custom_call.1} parent=51 // pred_check_branch
          %308 = sbr.rel (%p306) target = $region56
        $region55: #{tpu_custom_call.1} parent=51 // pred_region
          %p309 = scmp.lt.s32.totalorder %s19, 1
          %s310 = scalar_select %p309, %s19, 1
          %s311 = smul.addr %s310, 3
          %s312 = smul.addr %s311, 4
          %s313 = scalar_lea.vmem %s0, %s312
        $region56: #{tpu_custom_call.1} parent=51 // pred_fallthru
          _
      $region52: #{tpu_custom_call.1} parent=5 // pred_fallthru
        _
      %p314 = scmp.le.s32.totalorder 1, %s19
      %p315 = scmp.lt.s32.totalorder %s19, 3
      %p316 = pnand %p314, %p315
      %p317 = pneg %p316
      // Predicated region
      $region57: #{tpu_custom_call.1} parent=5 // pred_check
        _
      $region58: #{tpu_custom_call.1} parent=5 // pred_check_branch
        %319 = sbr.rel (%p316) target = $region60
      $region59: #{tpu_custom_call.1} parent=5 // pred_region
        %s320 = ssub.s32 %s19, 1
        %p321 = scmp.lt.s32.totalorder %s24, 1
        %s322 = scalar_select %p321, %s24, 1
        %s323 = smul.addr %s322, 3
        %s324 = smul.addr %s323, 4
        %s325 = scalar_lea.vmem %s0, %s324
        %p326 = pneg %p45
        %p327 = pneg %p42
        %p328 = pneg %p66
        %p329 = pneg %p63
        %p330 = pneg %p87
        %p331 = pneg %p84
        %p332 = pneg %p108
        %p333 = pneg %p105
        %p334 = pneg %p129
        %p335 = pneg %p126
        %p336 = pneg %p150
        %p337 = pneg %p147
        %p338 = pneg %p171
        %p339 = pneg %p168
        %p340 = pneg %p192
        %p341 = pneg %p189
        %p342 = pneg %p213
        %p343 = pneg %p210
        %p344 = pneg %p234
        %p345 = pneg %p231
        %p346 = pneg %p260
        %p347 = pneg %p257
        %s348 = sand.u32 %s247, 1
        %s349 = scalar_lea.sflag [#allocation3], %s348
        %s350 = sand.u32 %s247, 1
        %s351 = smul.addr %s350, 8
        %s352 = scalar_lea.vmem [#allocation2], %s351
        %p353 = scmp.lt.s32.totalorder %s24, 1
        %s354 = scalar_select %p353, %s24, 1
        %s355 = smul.addr %s354, 3
        %s356 = smul.addr %s355, 4
        %s357 = scalar_lea.vmem %s0, %s356
        %v358 = vld [vmem:[%s1] ss:$2 sm:$0x3]
        %s359 = scalar_lea.vmem %s1, 1
        %v360 = vld [vmem:[%s359] ss:$2 sm:$0x3]
        %v361 = vld [vmem:[%s357] sm:$0xff]
        %v363 = vlaneseq
        %v364 = vshrl.u32 %v363, 7
        %v365 = vsub.s32 0, %v364
        %v366 = vrot.slane %v358, %v365
        %v367 = vlaneseq
        %v368 = vshrl.u32 %v367, 7
        %v369 = vsub.s32 1, %v368
        %v370 = vrot.slane %v358, %v369
        %v371 = vcombine.low %v366, %v370
        %v373 = vmul.f32 %v361, %v371
        %v374 = vld [vmem:[%s2] sm:$0xf]
        %376 = vset.pattern.permute.xlu0 0
        %377 = vperm.xlu0 %376, %v374
        %v378 = vpop.permute.xlu0 %377
        %v380 = vunpack.c.l.s4 839922192
        %v381 = vunpack.c.0.s8 %v380
        %v382 = vlaneseq
        %v383 = vshrl.u32 %v382, 7
        %v384 = vsub.s32 %v381, %v383
        %v385 = vrot.slane %v378, %v384
        %v387 = vmul.f32 %v373, %v385
        %v388 = vadd.f32 %v387, 0.0
        %v389 = vld [vmem:[%s357] sm:$0xff]
        %v390 = vld [vmem:[%s357 + $0x8] sm:$0xf]
        %391 = vset.pattern.permute.xlu0 1
        %392 = vperm.xlu0 %391, %v374
        %v393 = vpop.permute.xlu0 %392
        %v395 = vunpack.c.l.s4 839922192
        %v396 = vunpack.c.0.s8 %v395
        %v397 = vlaneseq
        %v398 = vshrl.u32 %v397, 7
        %v399 = vsub.s32 %v396, %v398
        %v400 = vrot.slane %v393, %v399
        %v402 = vmul.f32 %v389, %v400
        %v403 = vmul.f32 %v390, %v400
        %406 = vrot.lane.b32.xlu0 %v402, 127
        %v407 = vpop.permute.xlu0 %406
        %408 = vrot.lane.b32.xlu0 %v403, 127
        %v409 = vpop.permute.xlu0 %408
        %v410 = vrot.slane %v407, 4
        %v411 = vrot.slane %v409, 4
        %vm412 = vcmask 1043456
        %v413 = vsel %vm412, %v410, %v411
        %vm414 = vcmask 1039360
        %v415 = vsel %vm414, %v407, %v413
        %v417 = vadd.f32 %v388, %v415
        %v419 = vlaneseq
        %v420 = vshrl.u32 %v419, 7
        %v421 = vsub.s32 0, %v420
        %v422 = vrot.slane %v360, %v421
        %v423 = vlaneseq
        %v424 = vshrl.u32 %v423, 7
        %v425 = vsub.s32 1, %v424
        %v426 = vrot.slane %v360, %v425
        %v427 = vcombine.low %v422, %v426
        %428 = vrot.lane.b32.xlu0 %v427, 2
        %v429 = vpop.permute.xlu0 %428
        %v430 = vrot.slane %v429, 4
        %vm431 = vcmask 15360
        %v432 = vsel %vm431, %v430, %v429
        %v435 = vmul.f32 %v389, %v432
        %v436 = vmul.f32 %v390, %v430
        %v437 = vld [vmem:[%s2] sm:$0xf]
        %439 = vset.pattern.permute.xlu0 2
        %440 = vperm.xlu0 %439, %v437
        %v441 = vpop.permute.xlu0 %440
        %v443 = vunpack.c.l.s4 839922192
        %v444 = vunpack.c.0.s8 %v443
        %v445 = vlaneseq
        %v446 = vshrl.u32 %v445, 7
        %v447 = vsub.s32 %v444, %v446
        %v448 = vrot.slane %v441, %v447
        %v450 = vmul.f32 %v435, %v448
        %v451 = vmul.f32 %v436, %v448
        %454 = vrot.lane.b32.xlu0 %v450, 126
        %v455 = vpop.permute.xlu0 %454
        %456 = vrot.lane.b32.xlu0 %v451, 126
        %v457 = vpop.permute.xlu0 %456
        %v458 = vrot.slane %v455, 4
        %v459 = vrot.slane %v457, 4
        %v460 = vsel %vm412, %v458, %v459
        %vm461 = vcmask 1031168
        %v462 = vsel %vm461, %v455, %v460
        %v464 = vadd.f32 %v417, %v462
        %v465 = vld [vmem:[%s357] sm:$0xff]
        %v466 = vld [vmem:[%s357 + $0x8] sm:$0xf]
        %467 = vrot.lane.b32.xlu0 %v371, 16
        %v468 = vpop.permute.xlu0 %467
        %v469 = vrot.slane %v468, 4
        %vm470 = vcmask 130048
        %v471 = vsel %vm470, %v469, %v468
        %v474 = vmul.f32 %v465, %v471
        %v475 = vmul.f32 %v466, %v469
        %v476 = vld [vmem:[%s2] sm:$0xf]
        %478 = vset.pattern.permute.xlu0 3
        %479 = vperm.xlu0 %478, %v476
        %v480 = vpop.permute.xlu0 %479
        %v482 = vunpack.c.l.s4 839922192
        %v483 = vunpack.c.0.s8 %v482
        %v484 = vlaneseq
        %v485 = vshrl.u32 %v484, 7
        %v486 = vsub.s32 %v483, %v485
        %v487 = vrot.slane %v480, %v486
        %v489 = vmul.f32 %v474, %v487
        %v490 = vmul.f32 %v475, %v487
        %493 = vrot.lane.b32.xlu0 %v489, 112
        %v494 = vpop.permute.xlu0 %493
        %495 = vrot.lane.b32.xlu0 %v490, 112
        %v496 = vpop.permute.xlu0 %495
        %v497 = vrot.slane %v494, 4
        %v498 = vrot.slane %v496, 4
        %v499 = vsel %vm412, %v497, %v498
        %vm500 = vcmask 916480
        %v501 = vsel %vm500, %v494, %v499
        %v503 = vadd.f32 %v464, %v501
        %v504 = vld [vmem:[%s357] sm:$0xff]
        %v505 = vld [vmem:[%s357 + $0x8] sm:$0xf]
        %506 = vset.pattern.permute.xlu0 4
        %507 = vperm.xlu0 %506, %v476
        %v508 = vpop.permute.xlu0 %507
        %v510 = vunpack.c.l.s4 839922192
        %v511 = vunpack.c.0.s8 %v510
        %v512 = vlaneseq
        %v513 = vshrl.u32 %v512, 7
        %v514 = vsub.s32 %v511, %v513
        %v515 = vrot.slane %v508, %v514
        %v517 = vmul.f32 %v504, %v515
        %v518 = vmul.f32 %v505, %v515
        %521 = vrot.lane.b32.xlu0 %v517, 111
        %v522 = vpop.permute.xlu0 %521
        %523 = vrot.lane.b32.xlu0 %v518, 111
        %v524 = vpop.permute.xlu0 %523
        %v525 = vrot.slane %v522, 4
        %v526 = vrot.slane %v524, 4
        %v527 = vsel %vm412, %v525, %v526
        %vm528 = vcmask 908288
        %v529 = vsel %vm528, %v522, %v527
        %v531 = vadd.f32 %v503, %v529
        %532 = vrot.lane.b32.xlu0 %v427, 18
        %v533 = vpop.permute.xlu0 %532
        %v534 = vrot.slane %v533, 4
        %vm535 = vcmask 146432
        %v536 = vsel %vm535, %v534, %v533
        %v539 = vmul.f32 %v504, %v536
        %v540 = vmul.f32 %v505, %v534
        %v541 = vld [vmem:[%s2] sm:$0xf]
        %543 = vset.pattern.permute.xlu0 5
        %544 = vperm.xlu0 %543, %v541
        %v545 = vpop.permute.xlu0 %544
        %v547 = vunpack.c.l.s4 839922192
        %v548 = vunpack.c.0.s8 %v547
        %v549 = vlaneseq
        %v550 = vshrl.u32 %v549, 7
        %v551 = vsub.s32 %v548, %v550
        %v552 = vrot.slane %v545, %v551
        %v554 = vmul.f32 %v539, %v552
        %v555 = vmul.f32 %v540, %v552
        %558 = vrot.lane.b32.xlu0 %v554, 110
        %v559 = vpop.permute.xlu0 %558
        %560 = vrot.lane.b32.xlu0 %v555, 110
        %v561 = vpop.permute.xlu0 %560
        %v562 = vrot.slane %v559, 4
        %v563 = vrot.slane %v561, 4
        %v564 = vsel %vm412, %v562, %v563
        %vm565 = vcmask 900096
        %v566 = vsel %vm565, %v559, %v564
        %v568 = vadd.f32 %v531, %v566
        %v569 = vld [vmem:[%s357] sm:$0xff]
        %v570 = vld [vmem:[%s357 + $0x8] sm:$0xf]
        %571 = vrot.lane.b32.xlu0 %v371, 32
        %v572 = vpop.permute.xlu0 %571
        %v573 = vrot.slane %v572, 4
        %vm574 = vcmask 261120
        %v575 = vsel %vm574, %v573, %v572
        %v578 = vmul.f32 %v569, %v575
        %v579 = vmul.f32 %v570, %v573
        %v580 = vld [vmem:[%s2] sm:$0xf]
        %582 = vset.pattern.permute.xlu0 6
        %583 = vperm.xlu0 %582, %v580
        %v584 = vpop.permute.xlu0 %583
        %v586 = vunpack.c.l.s4 839922192
        %v587 = vunpack.c.0.s8 %v586
        %v588 = vlaneseq
        %v589 = vshrl.u32 %v588, 7
        %v590 = vsub.s32 %v587, %v589
        %v591 = vrot.slane %v584, %v590
        %v593 = vmul.f32 %v578, %v591
        %v594 = vmul.f32 %v579, %v591
        %597 = vrot.lane.b32.xlu0 %v593, 96
        %v598 = vpop.permute.xlu0 %597
        %599 = vrot.lane.b32.xlu0 %v594, 96
        %v600 = vpop.permute.xlu0 %599
        %v601 = vrot.slane %v598, 4
        %v602 = vrot.slane %v600, 4
        %v603 = vsel %vm412, %v601, %v602
        %vm604 = vcmask 785408
        %v605 = vsel %vm604, %v598, %v603
        %v607 = vadd.f32 %v568, %v605
        %v608 = vld [vmem:[%s357] sm:$0xff]
        %v609 = vld [vmem:[%s357 + $0x8] sm:$0xf]
        %610 = vset.pattern.permute.xlu0 7
        %611 = vperm.xlu0 %610, %v580
        %v612 = vpop.permute.xlu0 %611
        %v614 = vunpack.c.l.s4 839922192
        %v615 = vunpack.c.0.s8 %v614
        %v616 = vlaneseq
        %v617 = vshrl.u32 %v616, 7
        %v618 = vsub.s32 %v615, %v617
        %v619 = vrot.slane %v612, %v618
        %v621 = vmul.f32 %v608, %v619
        %v622 = vmul.f32 %v609, %v619
        %625 = vrot.lane.b32.xlu0 %v621, 95
        %v626 = vpop.permute.xlu0 %625
        %627 = vrot.lane.b32.xlu0 %v622, 95
        %v628 = vpop.permute.xlu0 %627
        %v629 = vrot.slane %v626, 4
        %v630 = vrot.slane %v628, 4
        %v631 = vsel %vm412, %v629, %v630
        %vm632 = vcmask 777216
        %v633 = vsel %vm632, %v626, %v631
        %v635 = vadd.f32 %v607, %v633
        %636 = vrot.lane.b32.xlu0 %v427, 34
        %v637 = vpop.permute.xlu0 %636
        %v638 = vrot.slane %v637, 4
        %vm639 = vcmask 277504
        %v640 = vsel %vm639, %v638, %v637
        %v643 = vmul.f32 %v608, %v640
        %v644 = vmul.f32 %v609, %v638
        %v645 = vld [vmem:[%s2] sm:$0xf]
        %647 = vset.pattern.permute.xlu0 8
        %648 = vperm.xlu0 %647, %v645
        %v649 = vpop.permute.xlu0 %648
        %v651 = vunpack.c.l.s4 839922192
        %v652 = vunpack.c.0.s8 %v651
        %v653 = vlaneseq
        %v654 = vshrl.u32 %v653, 7
        %v655 = vsub.s32 %v652, %v654
        %v656 = vrot.slane %v649, %v655
        %v658 = vmul.f32 %v643, %v656
        %v659 = vmul.f32 %v644, %v656
        %662 = vrot.lane.b32.xlu0 %v658, 94
        %v663 = vpop.permute.xlu0 %662
        %664 = vrot.lane.b32.xlu0 %v659, 94
        %v665 = vpop.permute.xlu0 %664
        %v666 = vrot.slane %v663, 4
        %v667 = vrot.slane %v665, 4
        %v668 = vsel %vm412, %v666, %v667
        %vm669 = vcmask 769024
        %v670 = vsel %vm669, %v663, %v668
        %v672 = vadd.f32 %v635, %v670
        %v673 = vld [vmem:[%s3] sm:$0xf]
        %675 = vset.pattern.permute.xlu0 0
        %676 = vperm.xlu0 %675, %v673
        %v677 = vpop.permute.xlu0 %676
        %v679 = vunpack.c.l.s4 839922192
        %v680 = vunpack.c.0.s8 %v679
        %v681 = vlaneseq
        %v682 = vshrl.u32 %v681, 7
        %v683 = vsub.s32 %v680, %v682
        %v684 = vrot.slane %v677, %v683
        %v686 = vadd.f32 %v672, %v684
        %v688 = vcombine.high %v686, %v686
        %v690 = vsel %vm412, %v686, 0.0
        %v691 = vsel %vm412, %v688, 0.0
        %v692 = vadd.f32 %v690, %v691
        %693 = vadd.xlane.f32.xlu0 %v692
        %v694 = vpop.xlane.xlu0 %693
        %v695 = vmul.f32 %v694, 0.00390625
        %v698 = vunpack.c.l.s4 839922192
        %v699 = vunpack.c.0.s8 %v698
        %v700 = vlaneseq
        %v701 = vshrl.u32 %v700, 7
        %v702 = vsub.s32 %v699, %v701
        %v703 = vrot.slane %v695, %v702
        %v705 = vsub.f32 %v686, %v703
        %v706 = vmul.f32 %v705, %v705
        %v708 = vcombine.high %v706, %v706
        %v710 = vsel %vm412, %v706, 0.0
        %v711 = vsel %vm412, %v708, 0.0
        %v712 = vadd.f32 %v710, %v711
        %713 = vadd.xlane.f32.xlu0 %v712
        %v714 = vpop.xlane.xlu0 %713
        %v715 = vmul.f32 %v714, 0.00390625
        %v716 = vadd.f32 %v715, 1e-05
        %v717 = vrsqrt.pop %v716
        %v720 = vunpack.c.l.s4 839922192
        %v721 = vunpack.c.0.s8 %v720
        %v722 = vlaneseq
        %v723 = vshrl.u32 %v722, 7
        %v724 = vsub.s32 %v721, %v723
        %v725 = vrot.slane %v717, %v724
        %v727 = vmul.f32 %v705, %v725
        %v728 = vld [vmem:[%s4] sm:$0xf]
        %730 = vset.pattern.permute.xlu0 0
        %731 = vperm.xlu0 %730, %v728
        %v732 = vpop.permute.xlu0 %731
        %v734 = vunpack.c.l.s4 839922192
        %v735 = vunpack.c.0.s8 %v734
        %v736 = vlaneseq
        %v737 = vshrl.u32 %v736, 7
        %v738 = vsub.s32 %v735, %v737
        %v739 = vrot.slane %v732, %v738
        %v741 = vmul.f32 %v727, %v739
        %v742 = vld [vmem:[%s5] sm:$0xf]
        %744 = vset.pattern.permute.xlu0 0
        %745 = vperm.xlu0 %744, %v742
        %v746 = vpop.permute.xlu0 %745
        %v748 = vunpack.c.l.s4 839922192
        %v749 = vunpack.c.0.s8 %v748
        %v750 = vlaneseq
        %v751 = vshrl.u32 %v750, 7
        %v752 = vsub.s32 %v749, %v751
        %v753 = vrot.slane %v746, %v752
        %v755 = vadd.f32 %v741, %v753
        %v756 = vld [vmem:[%s6] sm:$0xff]
        %758 = vset.pattern.permute.xlu0 0
        %759 = vperm.xlu0 %758, %v756
        %v760 = vpop.permute.xlu0 %759
        %v763 = vlaneseq
        %v764 = vshrl.u32 %v763, 7
        %v765 = vsub.s32 0, %v764
        %v766 = vrot.slane %v755, %v765
        %v767 = vlaneseq
        %v768 = vshrl.u32 %v767, 7
        %v769 = vsub.s32 4, %v768
        %v770 = vrot.slane %v755, %v769
        %v773 = vlaneseq
        %v774 = vshrl.u32 %v773, 7
        %v775 = vsub.s32 0, %v774
        %v776 = vrot.slane %v766, %v775
        %v777 = vlaneseq
        %v778 = vshrl.u32 %v777, 7
        %v779 = vsub.s32 0, %v778
        %v780 = vrot.slane %v770, %v779
        %v781 = vmul.f32 %v760, %v776
        %v782 = vmul.f32 %v760, %v780
        %v783 = vadd.f32 %v781, 0.0
        %v784 = vadd.f32 %v782, 0.0
        %785 = vset.pattern.permute.xlu0 1
        %786 = vperm.xlu0 %785, %v756
        %v787 = vpop.permute.xlu0 %786
        %v789 = vlaneseq
        %v790 = vshrl.u32 %v789, 7
        %v791 = vsub.s32 1, %v790
        %v792 = vrot.slane %v755, %v791
        %v793 = vlaneseq
        %v794 = vshrl.u32 %v793, 7
        %v795 = vsub.s32 5, %v794
        %v796 = vrot.slane %v755, %v795
        %v799 = vlaneseq
        %v800 = vshrl.u32 %v799, 7
        %v801 = vsub.s32 1, %v800
        %v802 = vrot.slane %v792, %v801
        %v803 = vlaneseq
        %v804 = vshrl.u32 %v803, 7
        %v805 = vsub.s32 1, %v804
        %v806 = vrot.slane %v796, %v805
        %v807 = vmul.f32 %v787, %v802
        %v808 = vmul.f32 %v787, %v806
        %v809 = vadd.f32 %v783, %v807
        %v810 = vadd.f32 %v784, %v808
        %811 = vset.pattern.permute.xlu0 2
        %812 = vperm.xlu0 %811, %v756
        %v813 = vpop.permute.xlu0 %812
        %v815 = vlaneseq
        %v816 = vshrl.u32 %v815, 7
        %v817 = vsub.s32 2, %v816
        %v818 = vrot.slane %v755, %v817
        %v819 = vlaneseq
        %v820 = vshrl.u32 %v819, 7
        %v821 = vsub.s32 6, %v820
        %v822 = vrot.slane %v755, %v821
        %v825 = vlaneseq
        %v826 = vshrl.u32 %v825, 7
        %v827 = vsub.s32 2, %v826
        %v828 = vrot.slane %v818, %v827
        %v829 = vlaneseq
        %v830 = vshrl.u32 %v829, 7
        %v831 = vsub.s32 2, %v830
        %v832 = vrot.slane %v822, %v831
        %v833 = vmul.f32 %v813, %v828
        %v834 = vmul.f32 %v813, %v832
        %v835 = vadd.f32 %v809, %v833
        %v836 = vadd.f32 %v810, %v834
        %837 = vset.pattern.permute.xlu0 3
        %838 = vperm.xlu0 %837, %v756
        %v839 = vpop.permute.xlu0 %838
        %v841 = vlaneseq
        %v842 = vshrl.u32 %v841, 7
        %v843 = vsub.s32 3, %v842
        %v844 = vrot.slane %v755, %v843
        %v845 = vlaneseq
        %v846 = vshrl.u32 %v845, 7
        %v847 = vsub.s32 7, %v846
        %v848 = vrot.slane %v755, %v847
        %v851 = vlaneseq
        %v852 = vshrl.u32 %v851, 7
        %v853 = vsub.s32 3, %v852
        %v854 = vrot.slane %v844, %v853
        %v855 = vlaneseq
        %v856 = vshrl.u32 %v855, 7
        %v857 = vsub.s32 3, %v856
        %v858 = vrot.slane %v848, %v857
        %v859 = vmul.f32 %v839, %v854
        %v860 = vmul.f32 %v839, %v858
        %v861 = vadd.f32 %v835, %v859
        %v862 = vadd.f32 %v836, %v860
        %v863 = vld [vmem:[%s7] sm:$0xff]
        %865 = vset.pattern.permute.xlu0 0
        %866 = vperm.xlu0 %865, %v863
        %v867 = vpop.permute.xlu0 %866
        %v869 = vadd.f32 %v861, %v867
        %v870 = vadd.f32 %v862, %v867
        %v871 = vmul.f32 %v869, 0.5
        %v872 = vmul.f32 %v870, 0.5
        %v873 = vmul.f32 %v869, 0.70710677
        %v874 = vmul.f32 %v870, 0.70710677
        %vm875 = vcmp.ge.f32.partialorder %v873, 0.0
        %vm876 = vcmp.ge.f32.partialorder %v874, 0.0
        %v877 = vsel %vm875, 1.0, -1.0
        %v878 = vsel %vm876, 1.0, -1.0
        %v879 = vand.u32 2147483647, %v873
        %v880 = vand.u32 2147483647, %v874
        %v881 = vmul.f32 %v879, 0.3275911
        %v882 = vmul.f32 %v880, 0.3275911
        %v883 = vadd.f32 %v881, 1.0
        %v884 = vadd.f32 %v882, 1.0
        %v885 = vrcp.pop %v883
        %v886 = vrcp.pop %v884
        %v887 = vmul.f32 %v885, 1.0614054
        %v888 = vmul.f32 %v886, 1.0614054
        %v889 = vadd.f32 %v887, -1.4531521
        %v890 = vadd.f32 %v888, -1.4531521
        %v891 = vmul.f32 %v885, %v889
        %v892 = vmul.f32 %v886, %v890
        %v893 = vadd.f32 %v891, 1.4214138
        %v894 = vadd.f32 %v892, 1.4214138
        %v895 = vmul.f32 %v885, %v893
        %v896 = vmul.f32 %v886, %v894
        %v897 = vadd.f32 %v895, -0.28449672
        %v898 = vadd.f32 %v896, -0.28449672
        %v899 = vmul.f32 %v885, %v897
        %v900 = vmul.f32 %v886, %v898
        %v901 = vadd.f32 %v899, 0.2548296
        %v902 = vadd.f32 %v900, 0.2548296
        %v903 = vmul.f32 %v885, %v901
        %v904 = vmul.f32 %v886, %v902
        %v905 = vsub.f32 0.0, %v879
        %v906 = vsub.f32 0.0, %v880
        %v907 = vmul.f32 %v905, %v879
        %v908 = vmul.f32 %v906, %v880
        %v909 = vmul.f32 %v907, 1.442695
        %v910 = vpow.pop %v909
        %v911 = vmul.f32 %v908, 1.442695
        %v912 = vpow.pop %v911
        %v913 = vmul.f32 %v903, %v910
        %v914 = vmul.f32 %v904, %v912
        %v915 = vsub.f32 1.0, %v913
        %v916 = vsub.f32 1.0, %v914
        %v917 = vmul.f32 %v877, %v915
        %v918 = vmul.f32 %v878, %v916
        %v919 = vadd.f32 %v917, 1.0
        %v920 = vadd.f32 %v918, 1.0
        %v921 = vmul.f32 %v871, %v919
        %v922 = vmul.f32 %v872, %v920
        %v923 = vld [vmem:[%s9] sm:$0xf]
        %925 = vset.pattern.permute.xlu0 0
        %926 = vperm.xlu0 %925, %v923
        %v927 = vpop.permute.xlu0 %926
        %v929 = vunpack.c.l.s4 839922192
        %v930 = vunpack.c.0.s8 %v929
        %v931 = vlaneseq
        %v932 = vshrl.u32 %v931, 7
        %v933 = vsub.s32 %v930, %v932
        %v934 = vrot.slane %v927, %v933
        %v936 = vadd.f32 %v504, %v934
        %v937 = vadd.f32 %v505, %v934
        %v938 = vld [vmem:[%s8] sm:$0xf]
        %940 = vset.pattern.permute.xlu0 0
        %941 = vperm.xlu0 %940, %v938
        %v942 = vpop.permute.xlu0 %941
        %v944 = vlaneseq
        %v945 = vshrl.u32 %v944, 7
        %v946 = vsub.s32 0, %v945
        %v947 = vrot.slane %v921, %v946
        %v948 = vlaneseq
        %v949 = vshrl.u32 %v948, 7
        %v950 = vsub.s32 0, %v949
        %v951 = vrot.slane %v922, %v950
        %v952 = vmul.f32 %v942, %v947
        %v953 = vmul.f32 %v942, %v951
        %v956 = vcombine.low %v952, %v953
        %957 = vrot.lane.b32.xlu0 %v956, 17
        %v958 = vpop.permute.xlu0 %957
        %v959 = vrot.slane %v958, 4
        %vm960 = vcmask 138240
        %v961 = vsel %vm960, %v959, %v958
        %v964 = vadd.f32 %v936, %v961
        %v965 = vadd.f32 %v937, %v959
        %v966 = vld [vmem:[%s8] sm:$0xf]
        %968 = vset.pattern.permute.xlu0 1
        %969 = vperm.xlu0 %968, %v966
        %v970 = vpop.permute.xlu0 %969
        %v972 = vlaneseq
        %v973 = vshrl.u32 %v972, 7
        %v974 = vsub.s32 1, %v973
        %v975 = vrot.slane %v921, %v974
        %v976 = vlaneseq
        %v977 = vshrl.u32 %v976, 7
        %v978 = vsub.s32 1, %v977
        %v979 = vrot.slane %v922, %v978
        %v980 = vmul.f32 %v970, %v975
        %v981 = vmul.f32 %v970, %v979
        %v984 = vcombine.low %v980, %v981
        %985 = vrot.lane.b32.xlu0 %v984, 17
        %v986 = vpop.permute.xlu0 %985
        %v987 = vrot.slane %v986, 4
        %v988 = vsel %vm960, %v987, %v986
        %v991 = vadd.f32 %v964, %v988
        %v992 = vadd.f32 %v965, %v987
        %v993 = vld [vmem:[%s8] sm:$0xf]
        %995 = vset.pattern.permute.xlu0 2
        %996 = vperm.xlu0 %995, %v993
        %v997 = vpop.permute.xlu0 %996
        %v999 = vlaneseq
        %v1000 = vshrl.u32 %v999, 7
        %v1001 = vsub.s32 2, %v1000
        %v1002 = vrot.slane %v921, %v1001
        %v1003 = vlaneseq
        %v1004 = vshrl.u32 %v1003, 7
        %v1005 = vsub.s32 2, %v1004
        %v1006 = vrot.slane %v922, %v1005
        %v1007 = vmul.f32 %v997, %v1002
        %v1008 = vmul.f32 %v997, %v1006
        %v1011 = vcombine.low %v1007, %v1008
        %1012 = vrot.lane.b32.xlu0 %v1011, 17
        %v1013 = vpop.permute.xlu0 %1012
        %v1014 = vrot.slane %v1013, 4
        %v1015 = vsel %vm960, %v1014, %v1013
        %v1018 = vadd.f32 %v991, %v1015
        %v1019 = vadd.f32 %v992, %v1014
        %v1020 = vld [vmem:[%s8] sm:$0xf]
        %1022 = vset.pattern.permute.xlu0 3
        %1023 = vperm.xlu0 %1022, %v1020
        %v1024 = vpop.permute.xlu0 %1023
        %v1026 = vlaneseq
        %v1027 = vshrl.u32 %v1026, 7
        %v1028 = vsub.s32 3, %v1027
        %v1029 = vrot.slane %v921, %v1028
        %v1030 = vlaneseq
        %v1031 = vshrl.u32 %v1030, 7
        %v1032 = vsub.s32 3, %v1031
        %v1033 = vrot.slane %v922, %v1032
        %v1034 = vmul.f32 %v1024, %v1029
        %v1035 = vmul.f32 %v1024, %v1033
        %v1038 = vcombine.low %v1034, %v1035
        %1039 = vrot.lane.b32.xlu0 %v1038, 17
        %v1040 = vpop.permute.xlu0 %1039
        %v1041 = vrot.slane %v1040, 4
        %v1042 = vsel %vm960, %v1041, %v1040
        %v1045 = vadd.f32 %v1018, %v1042
        %v1046 = vadd.f32 %v1019, %v1041
        %v1047 = vld [vmem:[%s8] sm:$0xf]
        %1049 = vset.pattern.permute.xlu0 4
        %1050 = vperm.xlu0 %1049, %v1047
        %v1051 = vpop.permute.xlu0 %1050
        %v1053 = vlaneseq
        %v1054 = vshrl.u32 %v1053, 7
        %v1055 = vsub.s32 4, %v1054
        %v1056 = vrot.slane %v921, %v1055
        %v1057 = vlaneseq
        %v1058 = vshrl.u32 %v1057, 7
        %v1059 = vsub.s32 4, %v1058
        %v1060 = vrot.slane %v922, %v1059
        %v1061 = vmul.f32 %v1051, %v1056
        %v1062 = vmul.f32 %v1051, %v1060
        %v1065 = vcombine.low %v1061, %v1062
        %1066 = vrot.lane.b32.xlu0 %v1065, 17
        %v1067 = vpop.permute.xlu0 %1066
        %v1068 = vrot.slane %v1067, 4
        %v1069 = vsel %vm960, %v1068, %v1067
        %v1072 = vadd.f32 %v1045, %v1069
        %v1073 = vadd.f32 %v1046, %v1068
        %v1074 = vld [vmem:[%s8] sm:$0xf]
        %1076 = vset.pattern.permute.xlu0 5
        %1077 = vperm.xlu0 %1076, %v1074
        %v1078 = vpop.permute.xlu0 %1077
        %v1080 = vlaneseq
        %v1081 = vshrl.u32 %v1080, 7
        %v1082 = vsub.s32 5, %v1081
        %v1083 = vrot.slane %v921, %v1082
        %v1084 = vlaneseq
        %v1085 = vshrl.u32 %v1084, 7
        %v1086 = vsub.s32 5, %v1085
        %v1087 = vrot.slane %v922, %v1086
        %v1088 = vmul.f32 %v1078, %v1083
        %v1089 = vmul.f32 %v1078, %v1087
        %v1092 = vcombine.low %v1088, %v1089
        %1093 = vrot.lane.b32.xlu0 %v1092, 17
        %v1094 = vpop.permute.xlu0 %1093
        %v1095 = vrot.slane %v1094, 4
        %v1096 = vsel %vm960, %v1095, %v1094
        %v1099 = vadd.f32 %v1072, %v1096
        %v1100 = vadd.f32 %v1073, %v1095
        %v1101 = vld [vmem:[%s8] sm:$0xf]
        %1103 = vset.pattern.permute.xlu0 6
        %1104 = vperm.xlu0 %1103, %v1101
        %v1105 = vpop.permute.xlu0 %1104
        %v1107 = vlaneseq
        %v1108 = vshrl.u32 %v1107, 7
        %v1109 = vsub.s32 6, %v1108
        %v1110 = vrot.slane %v921, %v1109
        %v1111 = vlaneseq
        %v1112 = vshrl.u32 %v1111, 7
        %v1113 = vsub.s32 6, %v1112
        %v1114 = vrot.slane %v922, %v1113
        %v1115 = vmul.f32 %v1105, %v1110
        %v1116 = vmul.f32 %v1105, %v1114
        %v1119 = vcombine.low %v1115, %v1116
        %1120 = vrot.lane.b32.xlu0 %v1119, 17
        %v1121 = vpop.permute.xlu0 %1120
        %v1122 = vrot.slane %v1121, 4
        %v1123 = vsel %vm960, %v1122, %v1121
        %v1126 = vadd.f32 %v1099, %v1123
        %v1127 = vadd.f32 %v1100, %v1122
        %v1128 = vld [vmem:[%s8] sm:$0xf]
        %1130 = vset.pattern.permute.xlu0 7
        %1131 = vperm.xlu0 %1130, %v1128
        %v1132 = vpop.permute.xlu0 %1131
        %v1134 = vlaneseq
        %v1135 = vshrl.u32 %v1134, 7
        %v1136 = vsub.s32 7, %v1135
        %v1137 = vrot.slane %v921, %v1136
        %v1138 = vlaneseq
        %v1139 = vshrl.u32 %v1138, 7
        %v1140 = vsub.s32 7, %v1139
        %v1141 = vrot.slane %v922, %v1140
        %v1142 = vmul.f32 %v1132, %v1137
        %v1143 = vmul.f32 %v1132, %v1141
        %v1146 = vcombine.low %v1142, %v1143
        %1147 = vrot.lane.b32.xlu0 %v1146, 17
        %v1148 = vpop.permute.xlu0 %1147
        %v1149 = vrot.slane %v1148, 4
        %v1150 = vsel %vm960, %v1149, %v1148
        %v1153 = vadd.f32 %v1126, %v1150
        %v1154 = vadd.f32 %v1127, %v1149
        %1157 = vrot.lane.b32.xlu0 %v1153, 111
        %v1158 = vpop.permute.xlu0 %1157
        %1159 = vrot.lane.b32.xlu0 %v1154, 111
        %v1160 = vpop.permute.xlu0 %1159
        %v1161 = vrot.slane %v1158, 4
        %v1162 = vrot.slane %v1160, 4
        %v1163 = vsel %vm412, %v1161, %v1162
        %v1164 = vsel %vm528, %v1158, %v1163
        %1166 = vst [vmem:[%s352] sm:$0xff] %v1164
        %s1167 = sand.u32 %s247, 1
        %s1168 = scalar_lea.sflag [#allocation3], %s1167
        %s1169 = sand.u32 %s247, 1
        %s1170 = smul.addr %s1169, 8
        %s1171 = scalar_lea.vmem [#allocation2], %s1170
        // Predicated region
        $region61: #{tpu_custom_call.1} parent=59 // pred_check
          %p1172 = pneg %p257
        $region62: #{tpu_custom_call.1} parent=59 // pred_check_branch
          %1174 = sbr.rel (%p1172) target = $region64
        $region63: #{tpu_custom_call.1} parent=59 // pred_region
          %s1176 = ssub.s32 128, 128
          %1177 = vsyncadd %s1168, %s1176
          %s1178 = smul.addr %s24, 2
          %s1179 = smul.addr %s1178, 64
          %s1180 = scalar_lea.hbm %s10, %s1179
          %s1182 = sshll.u32 %s1171, 4
          %s1183 = int_to_ptr.vmem [resolvable:$true] %s1182
          %1185 = dma.vmem_to_hbm [thread:$0]  %s1183, 128, %s1180, %s1168
        $region64: #{tpu_custom_call.1} parent=59 // pred_fallthru
          _
      $region60: #{tpu_custom_call.1} parent=5 // pred_fallthru
        _
      %p1186 = scmp.le.s32.totalorder 2, %s19
      // Predicated region
      $region65: #{tpu_custom_call.1} parent=5 // pred_check
        %p1187 = pneg %p1186
      $region66: #{tpu_custom_call.1} parent=5 // pred_check_branch
        %1189 = sbr.rel (%p1187) target = $region68
      $region67: #{tpu_custom_call.1} parent=5 // pred_region
        %s1190 = ssub.s32 %s19, 2
        // Predicated region
        $region69: #{tpu_custom_call.1} parent=67 // pred_check
          %p1191 = pneg %p263
        $region70: #{tpu_custom_call.1} parent=67 // pred_check_branch
          %1193 = sbr.rel (%p1191) target = $region72
        $region71: #{tpu_custom_call.1} parent=67 // pred_region
          %s1194 = sand.u32 %s248, 1
          %s1195 = scalar_lea.sflag [#allocation3], %s1194
          %s1196 = sand.u32 %s248, 1
          %s1197 = smul.addr %s1196, 8
          %s1198 = scalar_lea.vmem [#allocation2], %s1197
          %1199 = dma.done %s1195, 128
        $region72: #{tpu_custom_call.1} parent=67 // pred_fallthru
          _
      $region68: #{tpu_custom_call.1} parent=5 // pred_fallthru
        _
    $region6: #{tpu_custom_call.1} parent=1 // loop_footer
      %s23 = sadd.s32 1, %s19
    $region7: #{tpu_custom_call.1} parent=1 // loop_footer_branch
      %18 = sbr.rel target = $region3
    $region8: #{tpu_custom_call.1} parent=1 // loop_exit
      _
    %1200 = vsyncpa [#allocation3], 1
    %s1201 = scalar_lea.sflag [#allocation3], 1
    %1202 = vsyncpa %s1201, 1

</llo_original>
